<compile_context>
chip_gen: v7x
topology: tpu7x:2x2x1
jax: 0.10.0
libtpu: 0.0.40
codegen_flags: <defaults>
</compile_context>

<pallas_src>
import numpy as np
import jax
import jax.numpy as jnp
from jax import lax
from jax.experimental import pallas as pl
from jax.experimental.pallas import tpu as pltpu


def _round_up(x, m):
    return ((x + m - 1) // m) * m


# ------------------------- kernel -------------------------

def detector_kernel(seg_ref, hm_ref, hic_ref, pm_ref, pic_ref, stat_ref, out_ref):
    C, H, W = seg_ref.shape
    h2, w2 = H // 2, W // 2
    Cp = hm_ref.shape[1]
    Pp = pm_ref.shape[1]

    # ---- pass 1: per-pixel first-argmax over the class axis ----------------
    def argmax_body(c, carry):
        best_val, best_idx = carry
        v = seg_ref[c]
        take = v > best_val              # strict '>' => first max wins (torch.max)
        return jnp.where(take, v, best_val), jnp.where(take, c, best_idx)

    if C > 1:
        _, best_idx = lax.fori_loop(
            1, C, argmax_body,
            (seg_ref[0], jnp.zeros((H, W), jnp.int32)),
            unroll=True)
    else:
        best_idx = jnp.zeros((H, W), jnp.int32)

    # ---- pass 2: per-class quadrant counts from the index map --------------
    # Quadrant order matches torch.concat([a, b, c, d]):
    #   a=[:h2,:w2], b=[h2:,:w2], c=[:h2,w2:], d=[h2:,w2:]
    idx_quads = (best_idx[:h2, :w2], best_idx[h2:, :w2],
                 best_idx[:h2, w2:], best_idx[h2:, w2:])
    quad_pixels = float(h2 * w2)
    inv_quad = 1.0 / quad_pixels
    inv_full = 1.0 / float(H * W)

    lane_h = jax.lax.broadcasted_iota(jnp.int32, (1, Cp), 1)   # hoisted out of loop
    lane_p = jax.lax.broadcasted_iota(jnp.int32, (1, Pp), 1)
    hist_row = jnp.zeros((1, Cp), jnp.float32)
    patch_row = jnp.zeros((1, Pp), jnp.float32)

    # Running per-quadrant totals: the last class is derived by subtraction,
    # saving one full compare/select/reduce sweep over the image.
    q_running = [jnp.float32(0.0)] * 4

    for c in range(C):
        if c < C - 1:
            qcounts = [jnp.sum(jnp.where(iq == c, 1.0, 0.0)) for iq in idx_quads]
            q_running = [r + q for r, q in zip(q_running, qcounts)]
        else:
            qcounts = [quad_pixels - r for r in q_running]   # exact: counts < 2^24
        full_frac = (qcounts[0] + qcounts[1] + qcounts[2] + qcounts[3]) * inv_full
        hist_row = jnp.where(lane_h == c, full_frac, hist_row)
        for k in range(4):
            patch_row = jnp.where(lane_p == (k * C + c),
                                  qcounts[k] * inv_quad, patch_row)

    # ---- Mahalanobis distances (padded lanes are zero -> no effect) --------
    def mahal(x_row, mean_ref, invcov_ref):
        d = x_row - mean_ref[...]                                     # (1, Np)
        t = jnp.dot(d, invcov_ref[...],
                    preferred_element_type=jnp.float32)               # (1, Np)
        return jnp.sqrt(jnp.maximum(jnp.sum(t * d), 0.0))

    diff_hist = mahal(hist_row, hm_ref, hic_ref)
    diff_patch = mahal(patch_row, pm_ref, pic_ref)

    # stats layout in SMEM: [hist_val_mean, hist_val_std,
    #                        patch_hist_val_mean, patch_hist_val_std]
    score = ((diff_hist - stat_ref[0]) / stat_ref[1]
             + (diff_patch - stat_ref[2]) / stat_ref[3])
    out_ref[...] = jnp.zeros(out_ref.shape, jnp.float32) + score


# ------------------------- wrapper -------------------------

def fixed_patch_class_detector(segmap, params):
    B, C, H, W = segmap.shape
    C4 = 4 * C
    # Pad the class dims to full 128-lane rows so the tiny Mahalanobis matmuls
    # are lane-aligned; padded mean/invcov entries are zero => no contribution.
    Cp = _round_up(C, 128)
    Pp = _round_up(C4, 128)

    hm = jnp.zeros((1, Cp), jnp.float32).at[0, :C].set(
        params["hist_mean"].reshape(-1).astype(jnp.float32))
    hic = jnp.zeros((Cp, Cp), jnp.float32).at[:C, :C].set(
        params["hist_invcov"].astype(jnp.float32))
    pm = jnp.zeros((1, Pp), jnp.float32).at[0, :C4].set(
        params["patch_hist_mean"].reshape(-1).astype(jnp.float32))
    pic = jnp.zeros((Pp, Pp), jnp.float32).at[:C4, :C4].set(
        params["patch_hist_invcov"].astype(jnp.float32))
    stats = jnp.stack([params["hist_val_mean"], params["hist_val_std"],
                       params["patch_hist_val_mean"],
                       params["patch_hist_val_std"]]).astype(jnp.float32)

    # scoped-VMEM budget: double-buffered segmap block + padded params + out slab
    est = (2 * C * H * W * 4
           + 2 * 4 * (Cp * Cp + Pp * Pp + Cp + Pp)
           + 2 * 8 * 128 * 4
           + (4 << 20))
    vmem_limit = int(min(64 * 1024 * 1024, max(32 * 1024 * 1024, est)))

    out = pl.pallas_call(
        detector_kernel,
        out_shape=jax.ShapeDtypeStruct((B, 8, 128), jnp.float32),
        grid_spec=pl.GridSpec(
            grid=(B,),
            in_specs=[
                pl.BlockSpec((None, C, H, W), lambda b: (b, 0, 0, 0)),
                pl.BlockSpec((1, Cp), lambda b: (0, 0)),
                pl.BlockSpec((Cp, Cp), lambda b: (0, 0)),
                pl.BlockSpec((1, Pp), lambda b: (0, 0)),
                pl.BlockSpec((Pp, Pp), lambda b: (0, 0)),
                pl.BlockSpec(memory_space=pltpu.MemorySpace.SMEM),
            ],
            out_specs=pl.BlockSpec((None, 8, 128), lambda b: (b, 0, 0)),
        ),
        compiler_params=pltpu.CompilerParams(
            dimension_semantics=("parallel",),
            vmem_limit_bytes=vmem_limit),
    )(segmap.astype(jnp.float32), hm, hic, pm, pic, stats)
    return out[:, 0, 0]


# ------------------------- pure-JAX reference -------------------------

def reference_forward(segmap, params):
    B, C, H, W = segmap.shape

    def histogram(s):  # (B, C, h, w) -> (B, C, 1)
        idx = jnp.argmax(s, axis=1)
        onehot = (idx[:, None, :, :] ==
                  jnp.arange(C)[None, :, None, None]).astype(jnp.float32)
        return jnp.mean(onehot, axis=(2, 3))[..., None]

    h2, w2 = H // 2, W // 2
    hist = histogram(segmap)
    patch_hist = jnp.concatenate([
        histogram(segmap[:, :, :h2, :w2]),
        histogram(segmap[:, :, h2:, :w2]),
        histogram(segmap[:, :, :h2, w2:]),
        histogram(segmap[:, :, h2:, w2:])], axis=1)

    def mahal(u, mean, invcov):
        d = u - mean
        return jnp.sqrt((d.T @ (invcov @ d))[0, 0])

    dh = jnp.stack([mahal(hist[i], params["hist_mean"],
                          params["hist_invcov"]) for i in range(B)])
    dp = jnp.stack([mahal(patch_hist[i], params["patch_hist_mean"],
                          params["patch_hist_invcov"]) for i in range(B)])
    dh = (dh - params["hist_val_mean"]) / params["hist_val_std"]
    dp = (dp - params["patch_hist_val_mean"]) / params["patch_hist_val_std"]
    return dh + dp


# ------------------------- main -------------------------

if __name__ == "__main__":
    B, C, S = 2, 5, 16          # batch, num_classes, segmap_size (small test size)
    key = jax.random.PRNGKey(0)
    k = jax.random.split(key, 8)

    a = jax.random.normal(k[0], (C, C), jnp.float32)
    b = jax.random.normal(k[1], (4 * C, 4 * C), jnp.float32)
    # Deterministic synthetic parameters (same shapes as the torch module's
    # __init__). Inverse covariances are made PSD so sqrt(m) is well-defined.
    params = dict(
        hist_mean=jax.random.normal(k[2], (C, 1), jnp.float32),
        hist_invcov=a @ a.T + 0.1 * jnp.eye(C, dtype=jnp.float32),
        patch_hist_mean=jax.random.normal(k[3], (4 * C, 1), jnp.float32),
        patch_hist_invcov=b @ b.T + 0.1 * jnp.eye(4 * C, dtype=jnp.float32),
        hist_val_mean=jax.random.normal(k[4], (), jnp.float32),
        hist_val_std=jnp.abs(jax.random.normal(k[5], (), jnp.float32)) + 0.5,
        patch_hist_val_mean=jax.random.normal(k[6], (), jnp.float32),
        patch_hist_val_std=jnp.abs(jax.random.normal(k[7], (), jnp.float32)) + 0.5,
    )
    segmap = jax.random.normal(jax.random.PRNGKey(1), (B, C, S, S), jnp.float32)

    out = jax.block_until_ready(fixed_patch_class_detector(segmap, params))
    ref = reference_forward(segmap, params)
    np.testing.assert_allclose(np.asarray(out), np.asarray(ref),
                               rtol=1e-4, atol=1e-4)
    print("KERNEL_OK")
</pallas_src>

<mosaic_0001>
module attributes {stable_mosaic.version = 11 : i64} {
  func.func @detector_kernel(%arg0: i32, %arg1: memref<1x5x16x16xf32, #tpu.memory_space<vmem>>, %arg2: memref<1x128xf32, #tpu.memory_space<vmem>>, %arg3: memref<128x128xf32, #tpu.memory_space<vmem>>, %arg4: memref<1x128xf32, #tpu.memory_space<vmem>>, %arg5: memref<128x128xf32, #tpu.memory_space<vmem>>, %arg6: memref<4xf32, #tpu.memory_space<smem>>, %arg7: memref<1x8x128xf32, #tpu.memory_space<vmem>>) attributes {dimension_semantics = [#tpu.dimension_semantics<parallel>], iteration_bounds = array<i64: 2>, scalar_prefetch = 0 : i64, scratch_operands = 0 : i64, tpu.core_type = #tpu.core_type<tc>, window_params = [{transform_indices = @transform_0, window_bounds = array<i64: 1, 5, 16, 16>}, {pipeline_mode = #tpu.pipeline_mode<synchronous>, transform_indices = @transform_1, window_bounds = array<i64: 1, 128>}, {pipeline_mode = #tpu.pipeline_mode<synchronous>, transform_indices = @transform_2, window_bounds = array<i64: 128, 128>}, {pipeline_mode = #tpu.pipeline_mode<synchronous>, transform_indices = @transform_3, window_bounds = array<i64: 1, 128>}, {pipeline_mode = #tpu.pipeline_mode<synchronous>, transform_indices = @transform_4, window_bounds = array<i64: 128, 128>}, {transform_indices = @transform_5, window_bounds = array<i64: 4>}, {transform_indices = @transform_6, window_bounds = array<i64: 1, 8, 128>}]} {
    %c0 = arith.constant 0 : index
    %c0_0 = arith.constant 0 : index
    %c0_1 = arith.constant 0 : index
    %c0_2 = arith.constant 0 : index
    %0 = vector.load %arg1[%c0, %c0_0, %c0_1, %c0_2] : memref<1x5x16x16xf32, #tpu.memory_space<vmem>>, vector<1x1x16x16xf32>
    %1 = vector.shape_cast %0 : vector<1x1x16x16xf32> to vector<16x16xf32>
    %c0_i32 = arith.constant 0 : i32
    %2 = vector.broadcast %c0_i32 : i32 to vector<16x16xi32>
    %c1_i32 = arith.constant 1 : i32
    %c0_3 = arith.constant 0 : index
    %3 = arith.index_cast %c1_i32 : i32 to index
    %c0_4 = arith.constant 0 : index
    %c0_5 = arith.constant 0 : index
    %4 = vector.load %arg1[%c0_3, %3, %c0_4, %c0_5] : memref<1x5x16x16xf32, #tpu.memory_space<vmem>>, vector<1x1x16x16xf32>
    %5 = vector.shape_cast %4 : vector<1x1x16x16xf32> to vector<16x16xf32>
    %6 = arith.cmpf ogt, %5, %1 : vector<16x16xf32>
    %7 = arith.select %6, %5, %1 : vector<16x16xi1>, vector<16x16xf32>
    %8 = vector.broadcast %c1_i32 : i32 to vector<16x16xi32>
    %9 = arith.select %6, %8, %2 : vector<16x16xi1>, vector<16x16xi32>
    %c2_i32 = arith.constant 2 : i32
    %c0_6 = arith.constant 0 : index
    %10 = arith.index_cast %c2_i32 : i32 to index
    %c0_7 = arith.constant 0 : index
    %c0_8 = arith.constant 0 : index
    %11 = vector.load %arg1[%c0_6, %10, %c0_7, %c0_8] : memref<1x5x16x16xf32, #tpu.memory_space<vmem>>, vector<1x1x16x16xf32>
    %12 = vector.shape_cast %11 : vector<1x1x16x16xf32> to vector<16x16xf32>
    %13 = arith.cmpf ogt, %12, %7 : vector<16x16xf32>
    %14 = arith.select %13, %12, %7 : vector<16x16xi1>, vector<16x16xf32>
    %15 = vector.broadcast %c2_i32 : i32 to vector<16x16xi32>
    %16 = arith.select %13, %15, %9 : vector<16x16xi1>, vector<16x16xi32>
    %c3_i32 = arith.constant 3 : i32
    %c0_9 = arith.constant 0 : index
    %17 = arith.index_cast %c3_i32 : i32 to index
    %c0_10 = arith.constant 0 : index
    %c0_11 = arith.constant 0 : index
    %18 = vector.load %arg1[%c0_9, %17, %c0_10, %c0_11] : memref<1x5x16x16xf32, #tpu.memory_space<vmem>>, vector<1x1x16x16xf32>
    %19 = vector.shape_cast %18 : vector<1x1x16x16xf32> to vector<16x16xf32>
    %20 = arith.cmpf ogt, %19, %14 : vector<16x16xf32>
    %21 = arith.select %20, %19, %14 : vector<16x16xi1>, vector<16x16xf32>
    %22 = vector.broadcast %c3_i32 : i32 to vector<16x16xi32>
    %23 = arith.select %20, %22, %16 : vector<16x16xi1>, vector<16x16xi32>
    %c4_i32 = arith.constant 4 : i32
    %c0_12 = arith.constant 0 : index
    %24 = arith.index_cast %c4_i32 : i32 to index
    %c0_13 = arith.constant 0 : index
    %c0_14 = arith.constant 0 : index
    %25 = vector.load %arg1[%c0_12, %24, %c0_13, %c0_14] : memref<1x5x16x16xf32, #tpu.memory_space<vmem>>, vector<1x1x16x16xf32>
    %26 = vector.shape_cast %25 : vector<1x1x16x16xf32> to vector<16x16xf32>
    %27 = arith.cmpf ogt, %26, %21 : vector<16x16xf32>
    %28 = arith.select %27, %26, %21 : vector<16x16xi1>, vector<16x16xf32>
    %29 = vector.broadcast %c4_i32 : i32 to vector<16x16xi32>
    %30 = arith.select %27, %29, %23 : vector<16x16xi1>, vector<16x16xi32>
    %c4_i32_15 = arith.constant 4 : i32
    %31 = vector.extract_strided_slice %30 {offsets = [0, 0], sizes = [8, 8], strides = [1, 1]} : vector<16x16xi32> to vector<8x8xi32>
    %32 = vector.extract_strided_slice %30 {offsets = [8, 0], sizes = [8, 8], strides = [1, 1]} : vector<16x16xi32> to vector<8x8xi32>
    %33 = vector.extract_strided_slice %30 {offsets = [0, 8], sizes = [8, 8], strides = [1, 1]} : vector<16x16xi32> to vector<8x8xi32>
    %34 = vector.extract_strided_slice %30 {offsets = [8, 8], sizes = [8, 8], strides = [1, 1]} : vector<16x16xi32> to vector<8x8xi32>
    %35 = tpu.iota {dimensions = array<i32: 1>} : vector<1x128xi32>
    %36 = tpu.iota {dimensions = array<i32: 1>} : vector<1x128xi32>
    %cst = arith.constant 0.000000e+00 : f32
    %37 = vector.broadcast %cst : f32 to vector<1x128xf32>
    %cst_16 = arith.constant 0.000000e+00 : f32
    %38 = vector.broadcast %cst_16 : f32 to vector<1x128xf32>
    %c0_i32_17 = arith.constant 0 : i32
    %39 = vector.broadcast %c0_i32_17 : i32 to vector<8x8xi32>
    %40 = arith.cmpi eq, %31, %39 : vector<8x8xi32>
    %cst_18 = arith.constant 1.000000e+00 : f32
    %cst_19 = arith.constant 0.000000e+00 : f32
    %41 = vector.broadcast %cst_18 : f32 to vector<8x8xf32>
    %42 = vector.broadcast %cst_19 : f32 to vector<8x8xf32>
    %43 = arith.select %40, %41, %42 : vector<8x8xi1>, vector<8x8xf32>
    %44 = vector.shape_cast %43 : vector<8x8xf32> to vector<1x8x8xf32>
    %cst_20 = arith.constant dense<0.000000e+00> : vector<1xf32>
    %45 = vector.multi_reduction <add>, %44, %cst_20 [1, 2] : vector<1x8x8xf32> to vector<1xf32>
    %46 = vector.shape_cast %45 : vector<1xf32> to vector<1x1x1xf32>
    %47 = vector.extract %46[0, 0, 0] : f32 from vector<1x1x1xf32>
    %c0_i32_21 = arith.constant 0 : i32
    %48 = vector.broadcast %c0_i32_21 : i32 to vector<8x8xi32>
    %49 = arith.cmpi eq, %32, %48 : vector<8x8xi32>
    %cst_22 = arith.constant 1.000000e+00 : f32
    %cst_23 = arith.constant 0.000000e+00 : f32
    %50 = vector.broadcast %cst_22 : f32 to vector<8x8xf32>
    %51 = vector.broadcast %cst_23 : f32 to vector<8x8xf32>
    %52 = arith.select %49, %50, %51 : vector<8x8xi1>, vector<8x8xf32>
    %53 = vector.shape_cast %52 : vector<8x8xf32> to vector<1x8x8xf32>
    %cst_24 = arith.constant dense<0.000000e+00> : vector<1xf32>
    %54 = vector.multi_reduction <add>, %53, %cst_24 [1, 2] : vector<1x8x8xf32> to vector<1xf32>
    %55 = vector.shape_cast %54 : vector<1xf32> to vector<1x1x1xf32>
    %56 = vector.extract %55[0, 0, 0] : f32 from vector<1x1x1xf32>
    %c0_i32_25 = arith.constant 0 : i32
    %57 = vector.broadcast %c0_i32_25 : i32 to vector<8x8xi32>
    %58 = arith.cmpi eq, %33, %57 : vector<8x8xi32>
    %cst_26 = arith.constant 1.000000e+00 : f32
    %cst_27 = arith.constant 0.000000e+00 : f32
    %59 = vector.broadcast %cst_26 : f32 to vector<8x8xf32>
    %60 = vector.broadcast %cst_27 : f32 to vector<8x8xf32>
    %61 = arith.select %58, %59, %60 : vector<8x8xi1>, vector<8x8xf32>
    %62 = vector.shape_cast %61 : vector<8x8xf32> to vector<1x8x8xf32>
    %cst_28 = arith.constant dense<0.000000e+00> : vector<1xf32>
    %63 = vector.multi_reduction <add>, %62, %cst_28 [1, 2] : vector<1x8x8xf32> to vector<1xf32>
    %64 = vector.shape_cast %63 : vector<1xf32> to vector<1x1x1xf32>
    %65 = vector.extract %64[0, 0, 0] : f32 from vector<1x1x1xf32>
    %c0_i32_29 = arith.constant 0 : i32
    %66 = vector.broadcast %c0_i32_29 : i32 to vector<8x8xi32>
    %67 = arith.cmpi eq, %34, %66 : vector<8x8xi32>
    %cst_30 = arith.constant 1.000000e+00 : f32
    %cst_31 = arith.constant 0.000000e+00 : f32
    %68 = vector.broadcast %cst_30 : f32 to vector<8x8xf32>
    %69 = vector.broadcast %cst_31 : f32 to vector<8x8xf32>
    %70 = arith.select %67, %68, %69 : vector<8x8xi1>, vector<8x8xf32>
    %71 = vector.shape_cast %70 : vector<8x8xf32> to vector<1x8x8xf32>
    %cst_32 = arith.constant dense<0.000000e+00> : vector<1xf32>
    %72 = vector.multi_reduction <add>, %71, %cst_32 [1, 2] : vector<1x8x8xf32> to vector<1xf32>
    %73 = vector.shape_cast %72 : vector<1xf32> to vector<1x1x1xf32>
    %74 = vector.extract %73[0, 0, 0] : f32 from vector<1x1x1xf32>
    %cst_33 = arith.constant 0.000000e+00 : f32
    %75 = arith.addf %cst_33, %47 : f32
    %cst_34 = arith.constant 0.000000e+00 : f32
    %76 = arith.addf %cst_34, %56 : f32
    %cst_35 = arith.constant 0.000000e+00 : f32
    %77 = arith.addf %cst_35, %65 : f32
    %cst_36 = arith.constant 0.000000e+00 : f32
    %78 = arith.addf %cst_36, %74 : f32
    %79 = arith.addf %47, %56 : f32
    %80 = arith.addf %79, %65 : f32
    %81 = arith.addf %80, %74 : f32
    %cst_37 = arith.constant 3.906250e-03 : f32
    %82 = arith.mulf %81, %cst_37 : f32
    %c0_i32_38 = arith.constant 0 : i32
    %83 = vector.broadcast %c0_i32_38 : i32 to vector<1x128xi32>
    %84 = arith.cmpi eq, %35, %83 : vector<1x128xi32>
    %85 = vector.broadcast %82 : f32 to vector<1x128xf32>
    %86 = arith.select %84, %85, %37 : vector<1x128xi1>, vector<1x128xf32>
    %c0_i32_39 = arith.constant 0 : i32
    %87 = vector.broadcast %c0_i32_39 : i32 to vector<1x128xi32>
    %88 = arith.cmpi eq, %36, %87 : vector<1x128xi32>
    %cst_40 = arith.constant 1.562500e-02 : f32
    %89 = arith.mulf %47, %cst_40 : f32
    %90 = vector.broadcast %89 : f32 to vector<1x128xf32>
    %91 = arith.select %88, %90, %38 : vector<1x128xi1>, vector<1x128xf32>
    %c5_i32 = arith.constant 5 : i32
    %92 = vector.broadcast %c5_i32 : i32 to vector<1x128xi32>
    %93 = arith.cmpi eq, %36, %92 : vector<1x128xi32>
    %cst_41 = arith.constant 1.562500e-02 : f32
    %94 = arith.mulf %56, %cst_41 : f32
    %95 = vector.broadcast %94 : f32 to vector<1x128xf32>
    %96 = arith.select %93, %95, %91 : vector<1x128xi1>, vector<1x128xf32>
    %c10_i32 = arith.constant 10 : i32
    %97 = vector.broadcast %c10_i32 : i32 to vector<1x128xi32>
    %98 = arith.cmpi eq, %36, %97 : vector<1x128xi32>
    %cst_42 = arith.constant 1.562500e-02 : f32
    %99 = arith.mulf %65, %cst_42 : f32
    %100 = vector.broadcast %99 : f32 to vector<1x128xf32>
    %101 = arith.select %98, %100, %96 : vector<1x128xi1>, vector<1x128xf32>
    %c15_i32 = arith.constant 15 : i32
    %102 = vector.broadcast %c15_i32 : i32 to vector<1x128xi32>
    %103 = arith.cmpi eq, %36, %102 : vector<1x128xi32>
    %cst_43 = arith.constant 1.562500e-02 : f32
    %104 = arith.mulf %74, %cst_43 : f32
    %105 = vector.broadcast %104 : f32 to vector<1x128xf32>
    %106 = arith.select %103, %105, %101 : vector<1x128xi1>, vector<1x128xf32>
    %c1_i32_44 = arith.constant 1 : i32
    %107 = vector.broadcast %c1_i32_44 : i32 to vector<8x8xi32>
    %108 = arith.cmpi eq, %31, %107 : vector<8x8xi32>
    %cst_45 = arith.constant 1.000000e+00 : f32
    %cst_46 = arith.constant 0.000000e+00 : f32
    %109 = vector.broadcast %cst_45 : f32 to vector<8x8xf32>
    %110 = vector.broadcast %cst_46 : f32 to vector<8x8xf32>
    %111 = arith.select %108, %109, %110 : vector<8x8xi1>, vector<8x8xf32>
    %112 = vector.shape_cast %111 : vector<8x8xf32> to vector<1x8x8xf32>
    %cst_47 = arith.constant dense<0.000000e+00> : vector<1xf32>
    %113 = vector.multi_reduction <add>, %112, %cst_47 [1, 2] : vector<1x8x8xf32> to vector<1xf32>
    %114 = vector.shape_cast %113 : vector<1xf32> to vector<1x1x1xf32>
    %115 = vector.extract %114[0, 0, 0] : f32 from vector<1x1x1xf32>
    %c1_i32_48 = arith.constant 1 : i32
    %116 = vector.broadcast %c1_i32_48 : i32 to vector<8x8xi32>
    %117 = arith.cmpi eq, %32, %116 : vector<8x8xi32>
    %cst_49 = arith.constant 1.000000e+00 : f32
    %cst_50 = arith.constant 0.000000e+00 : f32
    %118 = vector.broadcast %cst_49 : f32 to vector<8x8xf32>
    %119 = vector.broadcast %cst_50 : f32 to vector<8x8xf32>
    %120 = arith.select %117, %118, %119 : vector<8x8xi1>, vector<8x8xf32>
    %121 = vector.shape_cast %120 : vector<8x8xf32> to vector<1x8x8xf32>
    %cst_51 = arith.constant dense<0.000000e+00> : vector<1xf32>
    %122 = vector.multi_reduction <add>, %121, %cst_51 [1, 2] : vector<1x8x8xf32> to vector<1xf32>
    %123 = vector.shape_cast %122 : vector<1xf32> to vector<1x1x1xf32>
    %124 = vector.extract %123[0, 0, 0] : f32 from vector<1x1x1xf32>
    %c1_i32_52 = arith.constant 1 : i32
    %125 = vector.broadcast %c1_i32_52 : i32 to vector<8x8xi32>
    %126 = arith.cmpi eq, %33, %125 : vector<8x8xi32>
    %cst_53 = arith.constant 1.000000e+00 : f32
    %cst_54 = arith.constant 0.000000e+00 : f32
    %127 = vector.broadcast %cst_53 : f32 to vector<8x8xf32>
    %128 = vector.broadcast %cst_54 : f32 to vector<8x8xf32>
    %129 = arith.select %126, %127, %128 : vector<8x8xi1>, vector<8x8xf32>
    %130 = vector.shape_cast %129 : vector<8x8xf32> to vector<1x8x8xf32>
    %cst_55 = arith.constant dense<0.000000e+00> : vector<1xf32>
    %131 = vector.multi_reduction <add>, %130, %cst_55 [1, 2] : vector<1x8x8xf32> to vector<1xf32>
    %132 = vector.shape_cast %131 : vector<1xf32> to vector<1x1x1xf32>
    %133 = vector.extract %132[0, 0, 0] : f32 from vector<1x1x1xf32>
    %c1_i32_56 = arith.constant 1 : i32
    %134 = vector.broadcast %c1_i32_56 : i32 to vector<8x8xi32>
    %135 = arith.cmpi eq, %34, %134 : vector<8x8xi32>
    %cst_57 = arith.constant 1.000000e+00 : f32
    %cst_58 = arith.constant 0.000000e+00 : f32
    %136 = vector.broadcast %cst_57 : f32 to vector<8x8xf32>
    %137 = vector.broadcast %cst_58 : f32 to vector<8x8xf32>
    %138 = arith.select %135, %136, %137 : vector<8x8xi1>, vector<8x8xf32>
    %139 = vector.shape_cast %138 : vector<8x8xf32> to vector<1x8x8xf32>
    %cst_59 = arith.constant dense<0.000000e+00> : vector<1xf32>
    %140 = vector.multi_reduction <add>, %139, %cst_59 [1, 2] : vector<1x8x8xf32> to vector<1xf32>
    %141 = vector.shape_cast %140 : vector<1xf32> to vector<1x1x1xf32>
    %142 = vector.extract %141[0, 0, 0] : f32 from vector<1x1x1xf32>
    %143 = arith.addf %75, %115 : f32
    %144 = arith.addf %76, %124 : f32
    %145 = arith.addf %77, %133 : f32
    %146 = arith.addf %78, %142 : f32
    %147 = arith.addf %115, %124 : f32
    %148 = arith.addf %147, %133 : f32
    %149 = arith.addf %148, %142 : f32
    %cst_60 = arith.constant 3.906250e-03 : f32
    %150 = arith.mulf %149, %cst_60 : f32
    %c1_i32_61 = arith.constant 1 : i32
    %151 = vector.broadcast %c1_i32_61 : i32 to vector<1x128xi32>
    %152 = arith.cmpi eq, %35, %151 : vector<1x128xi32>
    %153 = vector.broadcast %150 : f32 to vector<1x128xf32>
    %154 = arith.select %152, %153, %86 : vector<1x128xi1>, vector<1x128xf32>
    %c1_i32_62 = arith.constant 1 : i32
    %155 = vector.broadcast %c1_i32_62 : i32 to vector<1x128xi32>
    %156 = arith.cmpi eq, %36, %155 : vector<1x128xi32>
    %cst_63 = arith.constant 1.562500e-02 : f32
    %157 = arith.mulf %115, %cst_63 : f32
    %158 = vector.broadcast %157 : f32 to vector<1x128xf32>
    %159 = arith.select %156, %158, %106 : vector<1x128xi1>, vector<1x128xf32>
    %c6_i32 = arith.constant 6 : i32
    %160 = vector.broadcast %c6_i32 : i32 to vector<1x128xi32>
    %161 = arith.cmpi eq, %36, %160 : vector<1x128xi32>
    %cst_64 = arith.constant 1.562500e-02 : f32
    %162 = arith.mulf %124, %cst_64 : f32
    %163 = vector.broadcast %162 : f32 to vector<1x128xf32>
    %164 = arith.select %161, %163, %159 : vector<1x128xi1>, vector<1x128xf32>
    %c11_i32 = arith.constant 11 : i32
    %165 = vector.broadcast %c11_i32 : i32 to vector<1x128xi32>
    %166 = arith.cmpi eq, %36, %165 : vector<1x128xi32>
    %cst_65 = arith.constant 1.562500e-02 : f32
    %167 = arith.mulf %133, %cst_65 : f32
    %168 = vector.broadcast %167 : f32 to vector<1x128xf32>
    %169 = arith.select %166, %168, %164 : vector<1x128xi1>, vector<1x128xf32>
    %c16_i32 = arith.constant 16 : i32
    %170 = vector.broadcast %c16_i32 : i32 to vector<1x128xi32>
    %171 = arith.cmpi eq, %36, %170 : vector<1x128xi32>
    %cst_66 = arith.constant 1.562500e-02 : f32
    %172 = arith.mulf %142, %cst_66 : f32
    %173 = vector.broadcast %172 : f32 to vector<1x128xf32>
    %174 = arith.select %171, %173, %169 : vector<1x128xi1>, vector<1x128xf32>
    %c2_i32_67 = arith.constant 2 : i32
    %175 = vector.broadcast %c2_i32_67 : i32 to vector<8x8xi32>
    %176 = arith.cmpi eq, %31, %175 : vector<8x8xi32>
    %cst_68 = arith.constant 1.000000e+00 : f32
    %cst_69 = arith.constant 0.000000e+00 : f32
    %177 = vector.broadcast %cst_68 : f32 to vector<8x8xf32>
    %178 = vector.broadcast %cst_69 : f32 to vector<8x8xf32>
    %179 = arith.select %176, %177, %178 : vector<8x8xi1>, vector<8x8xf32>
    %180 = vector.shape_cast %179 : vector<8x8xf32> to vector<1x8x8xf32>
    %cst_70 = arith.constant dense<0.000000e+00> : vector<1xf32>
    %181 = vector.multi_reduction <add>, %180, %cst_70 [1, 2] : vector<1x8x8xf32> to vector<1xf32>
    %182 = vector.shape_cast %181 : vector<1xf32> to vector<1x1x1xf32>
    %183 = vector.extract %182[0, 0, 0] : f32 from vector<1x1x1xf32>
    %c2_i32_71 = arith.constant 2 : i32
    %184 = vector.broadcast %c2_i32_71 : i32 to vector<8x8xi32>
    %185 = arith.cmpi eq, %32, %184 : vector<8x8xi32>
    %cst_72 = arith.constant 1.000000e+00 : f32
    %cst_73 = arith.constant 0.000000e+00 : f32
    %186 = vector.broadcast %cst_72 : f32 to vector<8x8xf32>
    %187 = vector.broadcast %cst_73 : f32 to vector<8x8xf32>
    %188 = arith.select %185, %186, %187 : vector<8x8xi1>, vector<8x8xf32>
    %189 = vector.shape_cast %188 : vector<8x8xf32> to vector<1x8x8xf32>
    %cst_74 = arith.constant dense<0.000000e+00> : vector<1xf32>
    %190 = vector.multi_reduction <add>, %189, %cst_74 [1, 2] : vector<1x8x8xf32> to vector<1xf32>
    %191 = vector.shape_cast %190 : vector<1xf32> to vector<1x1x1xf32>
    %192 = vector.extract %191[0, 0, 0] : f32 from vector<1x1x1xf32>
    %c2_i32_75 = arith.constant 2 : i32
    %193 = vector.broadcast %c2_i32_75 : i32 to vector<8x8xi32>
    %194 = arith.cmpi eq, %33, %193 : vector<8x8xi32>
    %cst_76 = arith.constant 1.000000e+00 : f32
    %cst_77 = arith.constant 0.000000e+00 : f32
    %195 = vector.broadcast %cst_76 : f32 to vector<8x8xf32>
    %196 = vector.broadcast %cst_77 : f32 to vector<8x8xf32>
    %197 = arith.select %194, %195, %196 : vector<8x8xi1>, vector<8x8xf32>
    %198 = vector.shape_cast %197 : vector<8x8xf32> to vector<1x8x8xf32>
    %cst_78 = arith.constant dense<0.000000e+00> : vector<1xf32>
    %199 = vector.multi_reduction <add>, %198, %cst_78 [1, 2] : vector<1x8x8xf32> to vector<1xf32>
    %200 = vector.shape_cast %199 : vector<1xf32> to vector<1x1x1xf32>
    %201 = vector.extract %200[0, 0, 0] : f32 from vector<1x1x1xf32>
    %c2_i32_79 = arith.constant 2 : i32
    %202 = vector.broadcast %c2_i32_79 : i32 to vector<8x8xi32>
    %203 = arith.cmpi eq, %34, %202 : vector<8x8xi32>
    %cst_80 = arith.constant 1.000000e+00 : f32
    %cst_81 = arith.constant 0.000000e+00 : f32
    %204 = vector.broadcast %cst_80 : f32 to vector<8x8xf32>
    %205 = vector.broadcast %cst_81 : f32 to vector<8x8xf32>
    %206 = arith.select %203, %204, %205 : vector<8x8xi1>, vector<8x8xf32>
    %207 = vector.shape_cast %206 : vector<8x8xf32> to vector<1x8x8xf32>
    %cst_82 = arith.constant dense<0.000000e+00> : vector<1xf32>
    %208 = vector.multi_reduction <add>, %207, %cst_82 [1, 2] : vector<1x8x8xf32> to vector<1xf32>
    %209 = vector.shape_cast %208 : vector<1xf32> to vector<1x1x1xf32>
    %210 = vector.extract %209[0, 0, 0] : f32 from vector<1x1x1xf32>
    %211 = arith.addf %143, %183 : f32
    %212 = arith.addf %144, %192 : f32
    %213 = arith.addf %145, %201 : f32
    %214 = arith.addf %146, %210 : f32
    %215 = arith.addf %183, %192 : f32
    %216 = arith.addf %215, %201 : f32
    %217 = arith.addf %216, %210 : f32
    %cst_83 = arith.constant 3.906250e-03 : f32
    %218 = arith.mulf %217, %cst_83 : f32
    %c2_i32_84 = arith.constant 2 : i32
    %219 = vector.broadcast %c2_i32_84 : i32 to vector<1x128xi32>
    %220 = arith.cmpi eq, %35, %219 : vector<1x128xi32>
    %221 = vector.broadcast %218 : f32 to vector<1x128xf32>
    %222 = arith.select %220, %221, %154 : vector<1x128xi1>, vector<1x128xf32>
    %c2_i32_85 = arith.constant 2 : i32
    %223 = vector.broadcast %c2_i32_85 : i32 to vector<1x128xi32>
    %224 = arith.cmpi eq, %36, %223 : vector<1x128xi32>
    %cst_86 = arith.constant 1.562500e-02 : f32
    %225 = arith.mulf %183, %cst_86 : f32
    %226 = vector.broadcast %225 : f32 to vector<1x128xf32>
    %227 = arith.select %224, %226, %174 : vector<1x128xi1>, vector<1x128xf32>
    %c7_i32 = arith.constant 7 : i32
    %228 = vector.broadcast %c7_i32 : i32 to vector<1x128xi32>
    %229 = arith.cmpi eq, %36, %228 : vector<1x128xi32>
    %cst_87 = arith.constant 1.562500e-02 : f32
    %230 = arith.mulf %192, %cst_87 : f32
    %231 = vector.broadcast %230 : f32 to vector<1x128xf32>
    %232 = arith.select %229, %231, %227 : vector<1x128xi1>, vector<1x128xf32>
    %c12_i32 = arith.constant 12 : i32
    %233 = vector.broadcast %c12_i32 : i32 to vector<1x128xi32>
    %234 = arith.cmpi eq, %36, %233 : vector<1x128xi32>
    %cst_88 = arith.constant 1.562500e-02 : f32
    %235 = arith.mulf %201, %cst_88 : f32
    %236 = vector.broadcast %235 : f32 to vector<1x128xf32>
    %237 = arith.select %234, %236, %232 : vector<1x128xi1>, vector<1x128xf32>
    %c17_i32 = arith.constant 17 : i32
    %238 = vector.broadcast %c17_i32 : i32 to vector<1x128xi32>
    %239 = arith.cmpi eq, %36, %238 : vector<1x128xi32>
    %cst_89 = arith.constant 1.562500e-02 : f32
    %240 = arith.mulf %210, %cst_89 : f32
    %241 = vector.broadcast %240 : f32 to vector<1x128xf32>
    %242 = arith.select %239, %241, %237 : vector<1x128xi1>, vector<1x128xf32>
    %c3_i32_90 = arith.constant 3 : i32
    %243 = vector.broadcast %c3_i32_90 : i32 to vector<8x8xi32>
    %244 = arith.cmpi eq, %31, %243 : vector<8x8xi32>
    %cst_91 = arith.constant 1.000000e+00 : f32
    %cst_92 = arith.constant 0.000000e+00 : f32
    %245 = vector.broadcast %cst_91 : f32 to vector<8x8xf32>
    %246 = vector.broadcast %cst_92 : f32 to vector<8x8xf32>
    %247 = arith.select %244, %245, %246 : vector<8x8xi1>, vector<8x8xf32>
    %248 = vector.shape_cast %247 : vector<8x8xf32> to vector<1x8x8xf32>
    %cst_93 = arith.constant dense<0.000000e+00> : vector<1xf32>
    %249 = vector.multi_reduction <add>, %248, %cst_93 [1, 2] : vector<1x8x8xf32> to vector<1xf32>
    %250 = vector.shape_cast %249 : vector<1xf32> to vector<1x1x1xf32>
    %251 = vector.extract %250[0, 0, 0] : f32 from vector<1x1x1xf32>
    %c3_i32_94 = arith.constant 3 : i32
    %252 = vector.broadcast %c3_i32_94 : i32 to vector<8x8xi32>
    %253 = arith.cmpi eq, %32, %252 : vector<8x8xi32>
    %cst_95 = arith.constant 1.000000e+00 : f32
    %cst_96 = arith.constant 0.000000e+00 : f32
    %254 = vector.broadcast %cst_95 : f32 to vector<8x8xf32>
    %255 = vector.broadcast %cst_96 : f32 to vector<8x8xf32>
    %256 = arith.select %253, %254, %255 : vector<8x8xi1>, vector<8x8xf32>
    %257 = vector.shape_cast %256 : vector<8x8xf32> to vector<1x8x8xf32>
    %cst_97 = arith.constant dense<0.000000e+00> : vector<1xf32>
    %258 = vector.multi_reduction <add>, %257, %cst_97 [1, 2] : vector<1x8x8xf32> to vector<1xf32>
    %259 = vector.shape_cast %258 : vector<1xf32> to vector<1x1x1xf32>
    %260 = vector.extract %259[0, 0, 0] : f32 from vector<1x1x1xf32>
    %c3_i32_98 = arith.constant 3 : i32
    %261 = vector.broadcast %c3_i32_98 : i32 to vector<8x8xi32>
    %262 = arith.cmpi eq, %33, %261 : vector<8x8xi32>
    %cst_99 = arith.constant 1.000000e+00 : f32
    %cst_100 = arith.constant 0.000000e+00 : f32
    %263 = vector.broadcast %cst_99 : f32 to vector<8x8xf32>
    %264 = vector.broadcast %cst_100 : f32 to vector<8x8xf32>
    %265 = arith.select %262, %263, %264 : vector<8x8xi1>, vector<8x8xf32>
    %266 = vector.shape_cast %265 : vector<8x8xf32> to vector<1x8x8xf32>
    %cst_101 = arith.constant dense<0.000000e+00> : vector<1xf32>
    %267 = vector.multi_reduction <add>, %266, %cst_101 [1, 2] : vector<1x8x8xf32> to vector<1xf32>
    %268 = vector.shape_cast %267 : vector<1xf32> to vector<1x1x1xf32>
    %269 = vector.extract %268[0, 0, 0] : f32 from vector<1x1x1xf32>
    %c3_i32_102 = arith.constant 3 : i32
    %270 = vector.broadcast %c3_i32_102 : i32 to vector<8x8xi32>
    %271 = arith.cmpi eq, %34, %270 : vector<8x8xi32>
    %cst_103 = arith.constant 1.000000e+00 : f32
    %cst_104 = arith.constant 0.000000e+00 : f32
    %272 = vector.broadcast %cst_103 : f32 to vector<8x8xf32>
    %273 = vector.broadcast %cst_104 : f32 to vector<8x8xf32>
    %274 = arith.select %271, %272, %273 : vector<8x8xi1>, vector<8x8xf32>
    %275 = vector.shape_cast %274 : vector<8x8xf32> to vector<1x8x8xf32>
    %cst_105 = arith.constant dense<0.000000e+00> : vector<1xf32>
    %276 = vector.multi_reduction <add>, %275, %cst_105 [1, 2] : vector<1x8x8xf32> to vector<1xf32>
    %277 = vector.shape_cast %276 : vector<1xf32> to vector<1x1x1xf32>
    %278 = vector.extract %277[0, 0, 0] : f32 from vector<1x1x1xf32>
    %279 = arith.addf %211, %251 : f32
    %280 = arith.addf %212, %260 : f32
    %281 = arith.addf %213, %269 : f32
    %282 = arith.addf %214, %278 : f32
    %283 = arith.addf %251, %260 : f32
    %284 = arith.addf %283, %269 : f32
    %285 = arith.addf %284, %278 : f32
    %cst_106 = arith.constant 3.906250e-03 : f32
    %286 = arith.mulf %285, %cst_106 : f32
    %c3_i32_107 = arith.constant 3 : i32
    %287 = vector.broadcast %c3_i32_107 : i32 to vector<1x128xi32>
    %288 = arith.cmpi eq, %35, %287 : vector<1x128xi32>
    %289 = vector.broadcast %286 : f32 to vector<1x128xf32>
    %290 = arith.select %288, %289, %222 : vector<1x128xi1>, vector<1x128xf32>
    %c3_i32_108 = arith.constant 3 : i32
    %291 = vector.broadcast %c3_i32_108 : i32 to vector<1x128xi32>
    %292 = arith.cmpi eq, %36, %291 : vector<1x128xi32>
    %cst_109 = arith.constant 1.562500e-02 : f32
    %293 = arith.mulf %251, %cst_109 : f32
    %294 = vector.broadcast %293 : f32 to vector<1x128xf32>
    %295 = arith.select %292, %294, %242 : vector<1x128xi1>, vector<1x128xf32>
    %c8_i32 = arith.constant 8 : i32
    %296 = vector.broadcast %c8_i32 : i32 to vector<1x128xi32>
    %297 = arith.cmpi eq, %36, %296 : vector<1x128xi32>
    %cst_110 = arith.constant 1.562500e-02 : f32
    %298 = arith.mulf %260, %cst_110 : f32
    %299 = vector.broadcast %298 : f32 to vector<1x128xf32>
    %300 = arith.select %297, %299, %295 : vector<1x128xi1>, vector<1x128xf32>
    %c13_i32 = arith.constant 13 : i32
    %301 = vector.broadcast %c13_i32 : i32 to vector<1x128xi32>
    %302 = arith.cmpi eq, %36, %301 : vector<1x128xi32>
    %cst_111 = arith.constant 1.562500e-02 : f32
    %303 = arith.mulf %269, %cst_111 : f32
    %304 = vector.broadcast %303 : f32 to vector<1x128xf32>
    %305 = arith.select %302, %304, %300 : vector<1x128xi1>, vector<1x128xf32>
    %c18_i32 = arith.constant 18 : i32
    %306 = vector.broadcast %c18_i32 : i32 to vector<1x128xi32>
    %307 = arith.cmpi eq, %36, %306 : vector<1x128xi32>
    %cst_112 = arith.constant 1.562500e-02 : f32
    %308 = arith.mulf %278, %cst_112 : f32
    %309 = vector.broadcast %308 : f32 to vector<1x128xf32>
    %310 = arith.select %307, %309, %305 : vector<1x128xi1>, vector<1x128xf32>
    %cst_113 = arith.constant 6.400000e+01 : f32
    %311 = arith.subf %cst_113, %279 : f32
    %cst_114 = arith.constant 6.400000e+01 : f32
    %312 = arith.subf %cst_114, %280 : f32
    %cst_115 = arith.constant 6.400000e+01 : f32
    %313 = arith.subf %cst_115, %281 : f32
    %cst_116 = arith.constant 6.400000e+01 : f32
    %314 = arith.subf %cst_116, %282 : f32
    %315 = arith.addf %311, %312 : f32
    %316 = arith.addf %315, %313 : f32
    %317 = arith.addf %316, %314 : f32
    %cst_117 = arith.constant 3.906250e-03 : f32
    %318 = arith.mulf %317, %cst_117 : f32
    %c4_i32_118 = arith.constant 4 : i32
    %319 = vector.broadcast %c4_i32_118 : i32 to vector<1x128xi32>
    %320 = arith.cmpi eq, %35, %319 : vector<1x128xi32>
    %321 = vector.broadcast %318 : f32 to vector<1x128xf32>
    %322 = arith.select %320, %321, %290 : vector<1x128xi1>, vector<1x128xf32>
    %c4_i32_119 = arith.constant 4 : i32
    %323 = vector.broadcast %c4_i32_119 : i32 to vector<1x128xi32>
    %324 = arith.cmpi eq, %36, %323 : vector<1x128xi32>
    %cst_120 = arith.constant 1.562500e-02 : f32
    %325 = arith.mulf %311, %cst_120 : f32
    %326 = vector.broadcast %325 : f32 to vector<1x128xf32>
    %327 = arith.select %324, %326, %310 : vector<1x128xi1>, vector<1x128xf32>
    %c9_i32 = arith.constant 9 : i32
    %328 = vector.broadcast %c9_i32 : i32 to vector<1x128xi32>
    %329 = arith.cmpi eq, %36, %328 : vector<1x128xi32>
    %cst_121 = arith.constant 1.562500e-02 : f32
    %330 = arith.mulf %312, %cst_121 : f32
    %331 = vector.broadcast %330 : f32 to vector<1x128xf32>
    %332 = arith.select %329, %331, %327 : vector<1x128xi1>, vector<1x128xf32>
    %c14_i32 = arith.constant 14 : i32
    %333 = vector.broadcast %c14_i32 : i32 to vector<1x128xi32>
    %334 = arith.cmpi eq, %36, %333 : vector<1x128xi32>
    %cst_122 = arith.constant 1.562500e-02 : f32
    %335 = arith.mulf %313, %cst_122 : f32
    %336 = vector.broadcast %335 : f32 to vector<1x128xf32>
    %337 = arith.select %334, %336, %332 : vector<1x128xi1>, vector<1x128xf32>
    %c19_i32 = arith.constant 19 : i32
    %338 = vector.broadcast %c19_i32 : i32 to vector<1x128xi32>
    %339 = arith.cmpi eq, %36, %338 : vector<1x128xi32>
    %cst_123 = arith.constant 1.562500e-02 : f32
    %340 = arith.mulf %314, %cst_123 : f32
    %341 = vector.broadcast %340 : f32 to vector<1x128xf32>
    %342 = arith.select %339, %341, %337 : vector<1x128xi1>, vector<1x128xf32>
    %c0_124 = arith.constant 0 : index
    %c0_125 = arith.constant 0 : index
    %343 = vector.load %arg2[%c0_124, %c0_125] : memref<1x128xf32, #tpu.memory_space<vmem>>, vector<1x128xf32>
    %344 = arith.subf %322, %343 : vector<1x128xf32>
    %c0_126 = arith.constant 0 : index
    %c0_127 = arith.constant 0 : index
    %345 = vector.load %arg3[%c0_126, %c0_127] : memref<128x128xf32, #tpu.memory_space<vmem>>, vector<128x128xf32>
    %cst_128 = arith.constant dense<0.000000e+00> : vector<1x128xf32>
    %346 = tpu.matmul %344, %345, %cst_128 {dimension_numbers = #tpu.dot_dimension_numbers<[1], [0], [0], [1], [0, 0, 1, 1], [], []>} : vector<1x128xf32>, vector<128x128xf32>, vector<1x128xf32> -> vector<1x128xf32>
    %347 = arith.mulf %346, %344 : vector<1x128xf32>
    %348 = vector.shape_cast %347 : vector<1x128xf32> to vector<1x1x128xf32>
    %cst_129 = arith.constant dense<0.000000e+00> : vector<1xf32>
    %349 = vector.multi_reduction <add>, %348, %cst_129 [1, 2] : vector<1x1x128xf32> to vector<1xf32>
    %350 = vector.shape_cast %349 : vector<1xf32> to vector<1x1x1xf32>
    %351 = vector.extract %350[0, 0, 0] : f32 from vector<1x1x1xf32>
    %cst_130 = arith.constant 0.000000e+00 : f32
    %352 = arith.maximumf %351, %cst_130 : f32
    %353 = math.sqrt %352 : f32
    %c0_131 = arith.constant 0 : index
    %c0_132 = arith.constant 0 : index
    %354 = vector.load %arg4[%c0_131, %c0_132] : memref<1x128xf32, #tpu.memory_space<vmem>>, vector<1x128xf32>
    %355 = arith.subf %342, %354 : vector<1x128xf32>
    %c0_133 = arith.constant 0 : index
    %c0_134 = arith.constant 0 : index
    %356 = vector.load %arg5[%c0_133, %c0_134] : memref<128x128xf32, #tpu.memory_space<vmem>>, vector<128x128xf32>
    %cst_135 = arith.constant dense<0.000000e+00> : vector<1x128xf32>
    %357 = tpu.matmul %355, %356, %cst_135 {dimension_numbers = #tpu.dot_dimension_numbers<[1], [0], [0], [1], [0, 0, 1, 1], [], []>} : vector<1x128xf32>, vector<128x128xf32>, vector<1x128xf32> -> vector<1x128xf32>
    %358 = arith.mulf %357, %355 : vector<1x128xf32>
    %359 = vector.shape_cast %358 : vector<1x128xf32> to vector<1x1x128xf32>
    %cst_136 = arith.constant dense<0.000000e+00> : vector<1xf32>
    %360 = vector.multi_reduction <add>, %359, %cst_136 [1, 2] : vector<1x1x128xf32> to vector<1xf32>
    %361 = vector.shape_cast %360 : vector<1xf32> to vector<1x1x1xf32>
    %362 = vector.extract %361[0, 0, 0] : f32 from vector<1x1x1xf32>
    %cst_137 = arith.constant 0.000000e+00 : f32
    %363 = arith.maximumf %362, %cst_137 : f32
    %364 = math.sqrt %363 : f32
    %c0_138 = arith.constant 0 : index
    %365 = memref.load %arg6[%c0_138] : memref<4xf32, #tpu.memory_space<smem>>
    %366 = arith.subf %353, %365 : f32
    %c1 = arith.constant 1 : index
    %367 = memref.load %arg6[%c1] : memref<4xf32, #tpu.memory_space<smem>>
    %368 = arith.divf %366, %367 : f32
    %c2 = arith.constant 2 : index
    %369 = memref.load %arg6[%c2] : memref<4xf32, #tpu.memory_space<smem>>
    %370 = arith.subf %364, %369 : f32
    %c3 = arith.constant 3 : index
    %371 = memref.load %arg6[%c3] : memref<4xf32, #tpu.memory_space<smem>>
    %372 = arith.divf %370, %371 : f32
    %373 = arith.addf %368, %372 : f32
    %cst_139 = arith.constant 0.000000e+00 : f32
    %374 = vector.broadcast %cst_139 : f32 to vector<8x128xf32>
    %375 = vector.broadcast %373 : f32 to vector<8x128xf32>
    %376 = arith.addf %374, %375 : vector<8x128xf32>
    %c0_140 = arith.constant 0 : index
    %c0_141 = arith.constant 0 : index
    %c0_142 = arith.constant 0 : index
    %377 = vector.load %arg7[%c0_140, %c0_141, %c0_142] : memref<1x8x128xf32, #tpu.memory_space<vmem>>, vector<1x8x128xf32>
    %378 = vector.shape_cast %377 : vector<1x8x128xf32> to vector<8x128xf32>
    %379 = vector.shape_cast %376 : vector<8x128xf32> to vector<1x8x128xf32>
    tpu.vector_store %arg7[%c0_140, %c0_141, %c0_142], %379 {strides = array<i32>} : memref<1x8x128xf32, #tpu.memory_space<vmem>>, vector<1x8x128xf32>,
    return
  }
  func.func @transform_0(%arg0: i32) -> (i32, i32, i32, i32) {
    %c0_i32 = arith.constant 0 : i32
    %c0_i32_0 = arith.constant 0 : i32
    %c0_i32_1 = arith.constant 0 : i32
    %c0_i32_2 = arith.constant 0 : i32
    return %arg0, %c0_i32, %c0_i32_0, %c0_i32_1 : i32, i32, i32, i32
  }
  func.func @transform_1(%arg0: i32) -> (i32, i32) {
    %c0_i32 = arith.constant 0 : i32
    %c0_i32_0 = arith.constant 0 : i32
    %c0_i32_1 = arith.constant 0 : i32
    return %c0_i32, %c0_i32_0 : i32, i32
  }
  func.func @transform_2(%arg0: i32) -> (i32, i32) {
    %c0_i32 = arith.constant 0 : i32
    %c0_i32_0 = arith.constant 0 : i32
    %c0_i32_1 = arith.constant 0 : i32
    return %c0_i32, %c0_i32_0 : i32, i32
  }
  func.func @transform_3(%arg0: i32) -> (i32, i32) {
    %c0_i32 = arith.constant 0 : i32
    %c0_i32_0 = arith.constant 0 : i32
    %c0_i32_1 = arith.constant 0 : i32
    return %c0_i32, %c0_i32_0 : i32, i32
  }
  func.func @transform_4(%arg0: i32) -> (i32, i32) {
    %c0_i32 = arith.constant 0 : i32
    %c0_i32_0 = arith.constant 0 : i32
    %c0_i32_1 = arith.constant 0 : i32
    return %c0_i32, %c0_i32_0 : i32, i32
  }
  func.func @transform_5(%arg0: i32) -> i32 {
    %c0_i32 = arith.constant 0 : i32
    %c0_i32_0 = arith.constant 0 : i32
    return %c0_i32 : i32
  }
  func.func @transform_6(%arg0: i32) -> (i32, i32, i32) {
    %c0_i32 = arith.constant 0 : i32
    %c0_i32_0 = arith.constant 0 : i32
    %c0_i32_1 = arith.constant 0 : i32
    return %arg0, %c0_i32, %c0_i32_0 : i32, i32, i32
  }
}

</mosaic_0001>

<llo_original>
// kernel: tpu_custom_call.1
$region0: #{tpu_custom_call.1}
  #allocation0 [shape = 'u32[]', space=smem, size = 0x4, offset = 0x4, fixed_abs, tag = 'smem constant byte address 0x4 - core index']
  #allocation1 [shape = 'u32[144,128]{1,0:T(1,128)}', space=vmem, size = 0x12000, scoped, tag = 'internal scratch']
  %s0 = inlined_call_operand.hbm [shape: f32[2,5,16,16], index: 0, kind: input, shape index: {}]
  %s1 = inlined_call_operand.vmem [shape: f32[1,128], index: 1, kind: input, shape index: {}]
  %s2 = inlined_call_operand.hbm [shape: f32[128,128], index: 2, kind: input, shape index: {}]
  %s3 = inlined_call_operand.vmem [shape: f32[1,128], index: 3, kind: input, shape index: {}]
  %s4 = inlined_call_operand.hbm [shape: f32[128,128], index: 4, kind: input, shape index: {}]
  %s5 = inlined_call_operand.vmem [shape: f32[4], index: 5, kind: input, shape index: {}]
  %s6 = inlined_call_operand.hbm [shape: f32[2,8,128], index: 6, kind: output, shape index: {}]
  %s7 = sld [smem:[#allocation0]]
  $region73: #{tpu_custom_call.1} parent=0
    _
  %s9 = ssub.s32 1, %s7
  %s10 = scalar_select 0, %s9, %s7
  $region1: #{tpu_custom_call.1} parent=0
    #allocation2 [shape = 'u8[81920]{0}', space=vmem, size = 0x14000, scoped, tag = 'input window, operand 0']
    #allocation3 [shape = 's32[2]{0}', space=sflag, size = 0x8, scoped, tag = 'scoped memory for tpu_custom_call.1']
    #allocation4 [shape = 's32[2]{0}', space=sflag, size = 0x8, scoped, tag = 'scoped memory for tpu_custom_call.1']
    #allocation5 [shape = 's32[2]{0}', space=sflag, size = 0x8, scoped, tag = 'scoped memory for tpu_custom_call.1']
    #allocation6 [shape = 'u8[65536]{0}', space=vmem, size = 0x10000, scoped, tag = 'input window, operand 2, single buffered']
    #allocation7 [shape = 's32[1]{0}', space=sflag, size = 0x4, scoped, tag = 'scoped memory for tpu_custom_call.1']
    #allocation8 [shape = 'u8[65536]{0}', space=vmem, size = 0x10000, scoped, tag = 'input window, operand 4, single buffered']
    #allocation9 [shape = 'u8[512]{0}', space=smem, size = 0x200, scoped, tag = 'input window, operand 5, single buffered']
    #allocation10 [shape = 'u8[8192]{0}', space=vmem, size = 0x2000, scoped, tag = 'output window, operand 0']
    %11 = vsyncpa [#allocation3], 0
    %s12 = scalar_lea.sflag [#allocation3], 1
    %13 = vsyncpa %s12, 0
    %14 = vsyncpa [#allocation7], 0
    %15 = vsyncpa [#allocation5], 0
    %16 = vsyncpa [#allocation4], 0
    %s17 = scalar_lea.sflag [#allocation4], 1
    %18 = vsyncpa %s17, 0
    loop: start=0, step=1, limit=4
    $region2: #{tpu_custom_call.1} parent=1 // loop_pre_header
      _
    $region3: #{tpu_custom_call.1} parent=1 // loop_header
      %s20 = sphi 0, %s24
      %p21 = scmp.ge.s32.totalorder %s20, 4
      %s30 = sphi 0, %s32
      %s33 = sphi 0, %s30
      %s34 = sphi 0, %s33
      %s50 = sphi 0, %s34
      %s54 = sphi 0, %s54
      %s56 = sphi 0, %s54
      %s57 = sphi 0, %s56
      %s71 = sphi 0, %s57
      %s75 = sphi 0, %s75
      %s77 = sphi 0, %s75
      %s78 = sphi 0, %s77
      %s92 = sphi 0, %s78
      %s96 = sphi 0, %s96
      %s98 = sphi 0, %s96
      %s99 = sphi 0, %s98
      %s113 = sphi 0, %s99
      %s117 = sphi 0, %s117
      %s119 = sphi 0, %s117
      %s120 = sphi 0, %s119
      %s134 = sphi 0, %s120
      %s138 = sphi 0, %s138
      %s140 = sphi 0, %s138
      %s141 = sphi 0, %s140
      %s155 = sphi 0, %s141
      %s161 = sphi 0, %s163
      %s164 = sphi 0, %s161
      %s165 = sphi 0, %s164
      %s181 = sphi 0, %s165
    $region4: #{tpu_custom_call.1} parent=1 // loop_header_branch
      %23 = sbr.rel (%p21) target = $region8
    $region5: #{tpu_custom_call.1} parent=1 // loop_body
      %s25 = ssub.s32 %s20, 1
      %s26 = ssub.s32 %s20, 2
      %s27 = sadd.s32 %s20, 1
      %s28 = ssub.s32 %s20, %s27
      %p29 = scmp.eq.s32.totalorder %s28, 0
      %s31 = sadd.s32 %s30, 1
      %s32 = scalar_select %p29, %s30, %s31
      %p35 = pneg %p29
      %p36 = scmp.eq.s32.totalorder %s20, 1
      %p37 = por %p35, %p36
      %p38 = scmp.ne.s32.totalorder %s30, %s33
      %p39 = scmp.eq.s32.totalorder %s20, 0
      %p40 = por %p38, %p39
      %p41 = scmp.ne.s32.totalorder %s30, %s33
      %p42 = scmp.eq.s32.totalorder %s25, 1
      %p43 = por %p41, %p42
      %p44 = scmp.ne.s32.totalorder %s33, %s34
      %p45 = scmp.eq.s32.totalorder %s25, 0
      %p46 = por %p44, %p45
      %p47 = scmp.ne.s32.totalorder %s33, %s34
      %p48 = scmp.eq.s32.totalorder %s26, 1
      %p49 = por %p47, %p48
      %p51 = scmp.ne.s32.totalorder %s34, %s50
      %p52 = scmp.eq.s32.totalorder %s26, 0
      %p53 = por %p51, %p52
      %s55 = sadd.s32 %s54, 1
      %p58 = scmp.eq.s32.totalorder %s20, 1
      %p59 = scmp.ne.s32.totalorder %s54, %s56
      %p60 = scmp.eq.s32.totalorder %s20, 0
      %p61 = por %p59, %p60
      %p62 = scmp.ne.s32.totalorder %s54, %s56
      %p63 = scmp.eq.s32.totalorder %s25, 1
      %p64 = por %p62, %p63
      %p65 = scmp.ne.s32.totalorder %s56, %s57
      %p66 = scmp.eq.s32.totalorder %s25, 0
      %p67 = por %p65, %p66
      %p68 = scmp.ne.s32.totalorder %s56, %s57
      %p69 = scmp.eq.s32.totalorder %s26, 1
      %p70 = por %p68, %p69
      %p72 = scmp.ne.s32.totalorder %s57, %s71
      %p73 = scmp.eq.s32.totalorder %s26, 0
      %p74 = por %p72, %p73
      %s76 = sadd.s32 %s75, 1
      %p79 = scmp.eq.s32.totalorder %s20, 1
      %p80 = scmp.ne.s32.totalorder %s75, %s77
      %p81 = scmp.eq.s32.totalorder %s20, 0
      %p82 = por %p80, %p81
      %p83 = scmp.ne.s32.totalorder %s75, %s77
      %p84 = scmp.eq.s32.totalorder %s25, 1
      %p85 = por %p83, %p84
      %p86 = scmp.ne.s32.totalorder %s77, %s78
      %p87 = scmp.eq.s32.totalorder %s25, 0
      %p88 = por %p86, %p87
      %p89 = scmp.ne.s32.totalorder %s77, %s78
      %p90 = scmp.eq.s32.totalorder %s26, 1
      %p91 = por %p89, %p90
      %p93 = scmp.ne.s32.totalorder %s78, %s92
      %p94 = scmp.eq.s32.totalorder %s26, 0
      %p95 = por %p93, %p94
      %s97 = sadd.s32 %s96, 1
      %p100 = scmp.eq.s32.totalorder %s20, 1
      %p101 = scmp.ne.s32.totalorder %s96, %s98
      %p102 = scmp.eq.s32.totalorder %s20, 0
      %p103 = por %p101, %p102
      %p104 = scmp.ne.s32.totalorder %s96, %s98
      %p105 = scmp.eq.s32.totalorder %s25, 1
      %p106 = por %p104, %p105
      %p107 = scmp.ne.s32.totalorder %s98, %s99
      %p108 = scmp.eq.s32.totalorder %s25, 0
      %p109 = por %p107, %p108
      %p110 = scmp.ne.s32.totalorder %s98, %s99
      %p111 = scmp.eq.s32.totalorder %s26, 1
      %p112 = por %p110, %p111
      %p114 = scmp.ne.s32.totalorder %s99, %s113
      %p115 = scmp.eq.s32.totalorder %s26, 0
      %p116 = por %p114, %p115
      %s118 = sadd.s32 %s117, 1
      %p121 = scmp.eq.s32.totalorder %s20, 1
      %p122 = scmp.ne.s32.totalorder %s117, %s119
      %p123 = scmp.eq.s32.totalorder %s20, 0
      %p124 = por %p122, %p123
      %p125 = scmp.ne.s32.totalorder %s117, %s119
      %p126 = scmp.eq.s32.totalorder %s25, 1
      %p127 = por %p125, %p126
      %p128 = scmp.ne.s32.totalorder %s119, %s120
      %p129 = scmp.eq.s32.totalorder %s25, 0
      %p130 = por %p128, %p129
      %p131 = scmp.ne.s32.totalorder %s119, %s120
      %p132 = scmp.eq.s32.totalorder %s26, 1
      %p133 = por %p131, %p132
      %p135 = scmp.ne.s32.totalorder %s120, %s134
      %p136 = scmp.eq.s32.totalorder %s26, 0
      %p137 = por %p135, %p136
      %s139 = sadd.s32 %s138, 1
      %p142 = scmp.eq.s32.totalorder %s20, 1
      %p143 = scmp.ne.s32.totalorder %s138, %s140
      %p144 = scmp.eq.s32.totalorder %s20, 0
      %p145 = por %p143, %p144
      %p146 = scmp.ne.s32.totalorder %s138, %s140
      %p147 = scmp.eq.s32.totalorder %s25, 1
      %p148 = por %p146, %p147
      %p149 = scmp.ne.s32.totalorder %s140, %s141
      %p150 = scmp.eq.s32.totalorder %s25, 0
      %p151 = por %p149, %p150
      %p152 = scmp.ne.s32.totalorder %s140, %s141
      %p153 = scmp.eq.s32.totalorder %s26, 1
      %p154 = por %p152, %p153
      %p156 = scmp.ne.s32.totalorder %s141, %s155
      %p157 = scmp.eq.s32.totalorder %s26, 0
      %p158 = por %p156, %p157
      %s159 = ssub.s32 %s20, %s27
      %p160 = scmp.eq.s32.totalorder %s159, 0
      %s162 = sadd.s32 %s161, 1
      %s163 = scalar_select %p160, %s161, %s162
      %p166 = pneg %p160
      %p167 = scmp.eq.s32.totalorder %s20, 1
      %p168 = por %p166, %p167
      %p169 = scmp.ne.s32.totalorder %s161, %s164
      %p170 = scmp.eq.s32.totalorder %s20, 0
      %p171 = por %p169, %p170
      %p172 = scmp.ne.s32.totalorder %s161, %s164
      %p173 = scmp.eq.s32.totalorder %s25, 1
      %p174 = por %p172, %p173
      %p175 = scmp.ne.s32.totalorder %s164, %s165
      %p176 = scmp.eq.s32.totalorder %s25, 0
      %p177 = por %p175, %p176
      %p178 = scmp.ne.s32.totalorder %s164, %s165
      %p179 = scmp.eq.s32.totalorder %s26, 1
      %p180 = por %p178, %p179
      %p182 = scmp.ne.s32.totalorder %s165, %s181
      %p183 = scmp.eq.s32.totalorder %s26, 0
      %p184 = por %p182, %p183
      %p185 = scmp.le.s32.totalorder 1, %s20
      %p186 = scmp.lt.s32.totalorder %s20, 3
      %p187 = pnand %p185, %p186
      %p188 = pneg %p187
      // Predicated region
      $region9: #{tpu_custom_call.1} parent=5 // pred_check
        _
      $region10: #{tpu_custom_call.1} parent=5 // pred_check_branch
        %190 = sbr.rel (%p187) target = $region12
      $region11: #{tpu_custom_call.1} parent=5 // pred_region
        %s191 = ssub.s32 %s20, 1
        // Predicated region
        $region13: #{tpu_custom_call.1} parent=11 // pred_check
          %p192 = pneg %p67
        $region14: #{tpu_custom_call.1} parent=11 // pred_check_branch
          %194 = sbr.rel (%p192) target = $region16
        $region15: #{tpu_custom_call.1} parent=11 // pred_region
          _
        $region16: #{tpu_custom_call.1} parent=11 // pred_fallthru
          _
        // Predicated region
        $region17: #{tpu_custom_call.1} parent=11 // pred_check
          %p195 = pneg %p88
        $region18: #{tpu_custom_call.1} parent=11 // pred_check_branch
          %197 = sbr.rel (%p195) target = $region20
        $region19: #{tpu_custom_call.1} parent=11 // pred_region
          %s199 = ssub.s32 2048, 2048
          %200 = vsyncadd [#allocation7], %s199
          %s201 = sshll.u32 [#allocation6], 4
          %s202 = int_to_ptr.vmem [resolvable:$true] %s201
          %207 = dma.hbm_to_vmem [thread:$0]  %s2, 2048, %s202, [#allocation7], 128, 128, 8
        $region20: #{tpu_custom_call.1} parent=11 // pred_fallthru
          _
        // Predicated region
        $region21: #{tpu_custom_call.1} parent=11 // pred_check
          %p208 = pneg %p109
        $region22: #{tpu_custom_call.1} parent=11 // pred_check_branch
          %210 = sbr.rel (%p208) target = $region24
        $region23: #{tpu_custom_call.1} parent=11 // pred_region
          _
        $region24: #{tpu_custom_call.1} parent=11 // pred_fallthru
          _
        // Predicated region
        $region25: #{tpu_custom_call.1} parent=11 // pred_check
          %p211 = pneg %p130
        $region26: #{tpu_custom_call.1} parent=11 // pred_check_branch
          %213 = sbr.rel (%p211) target = $region28
        $region27: #{tpu_custom_call.1} parent=11 // pred_region
          %s215 = ssub.s32 2048, 2048
          %216 = vsyncadd [#allocation7], %s215
          %s217 = sshll.u32 [#allocation8], 4
          %s218 = int_to_ptr.vmem [resolvable:$true] %s217
          %223 = dma.hbm_to_vmem [thread:$0]  %s4, 2048, %s218, [#allocation7], 128, 128, 8
        $region28: #{tpu_custom_call.1} parent=11 // pred_fallthru
          _
        // Predicated region
        $region29: #{tpu_custom_call.1} parent=11 // pred_check
          %p224 = pneg %p151
        $region30: #{tpu_custom_call.1} parent=11 // pred_check_branch
          %226 = sbr.rel (%p224) target = $region32
        $region31: #{tpu_custom_call.1} parent=11 // pred_region
          %s228 = ssub.s32 16, 16
          %229 = vsyncadd [#allocation5], %s228
          %s231 = sshll.u32 %s5, 4
          %s232 = int_to_ptr.vmem [resolvable:$true] %s231
          %234 = dma.vmem_to_smem %s232, 16, [#allocation9], [#allocation5]
        $region32: #{tpu_custom_call.1} parent=11 // pred_fallthru
          _
      $region12: #{tpu_custom_call.1} parent=5 // pred_fallthru
        _
      %p235 = scmp.lt.s32.totalorder %s20, 2
      // Predicated region
      $region33: #{tpu_custom_call.1} parent=5 // pred_check
        %p236 = pneg %p235
      $region34: #{tpu_custom_call.1} parent=5 // pred_check_branch
        %238 = sbr.rel (%p236) target = $region36
      $region35: #{tpu_custom_call.1} parent=5 // pred_region
        // Predicated region
        $region37: #{tpu_custom_call.1} parent=35 // pred_check
          %p239 = pneg %p40
        $region38: #{tpu_custom_call.1} parent=35 // pred_check_branch
          %241 = sbr.rel (%p239) target = $region40
        $region39: #{tpu_custom_call.1} parent=35 // pred_region
          %s242 = sand.u32 %s30, 1
          %s243 = scalar_lea.sflag [#allocation3], %s242
          %s244 = sand.u32 %s30, 1
          %s245 = smul.addr %s244, 80
          %s246 = scalar_lea.vmem [#allocation2], %s245
          %s248 = ssub.s32 1280, 1280
          %249 = vsyncadd %s243, %s248
          %s250 = smul.addr %s20, 10
          %s251 = smul.addr %s250, 128
          %s252 = scalar_lea.hbm %s0, %s251
          %s253 = sshll.u32 %s246, 4
          %s254 = int_to_ptr.vmem [resolvable:$true] %s253
          %259 = dma.hbm_to_vmem [thread:$0]  %s252, 1280, %s254, %s243, 128, 128, 8
        $region40: #{tpu_custom_call.1} parent=35 // pred_fallthru
          _
      $region36: #{tpu_custom_call.1} parent=5 // pred_fallthru
        _
      %p260 = scmp.le.s32.totalorder 1, %s20
      %p261 = scmp.lt.s32.totalorder %s20, 3
      %p262 = pnand %p260, %p261
      %p263 = pneg %p262
      // Predicated region
      $region41: #{tpu_custom_call.1} parent=5 // pred_check
        _
      $region42: #{tpu_custom_call.1} parent=5 // pred_check_branch
        %265 = sbr.rel (%p262) target = $region44
      $region43: #{tpu_custom_call.1} parent=5 // pred_region
        %s266 = ssub.s32 %s20, 1
        %s267 = sand.u32 %s33, 1
        %s268 = scalar_lea.sflag [#allocation3], %s267
        %s269 = sand.u32 %s33, 1
        %s270 = smul.addr %s269, 80
        %s271 = scalar_lea.vmem [#allocation2], %s270
        // Predicated region
        $region45: #{tpu_custom_call.1} parent=43 // pred_check
          %p272 = pneg %p46
        $region46: #{tpu_custom_call.1} parent=43 // pred_check_branch
          %274 = sbr.rel (%p272) target = $region48
        $region47: #{tpu_custom_call.1} parent=43 // pred_region
          %275 = dma.done %s268, 1280
        $region48: #{tpu_custom_call.1} parent=43 // pred_fallthru
          _
        // Predicated region
        $region49: #{tpu_custom_call.1} parent=43 // pred_check
          %p276 = pneg %p88
        $region50: #{tpu_custom_call.1} parent=43 // pred_check_branch
          %278 = sbr.rel (%p276) target = $region52
        $region51: #{tpu_custom_call.1} parent=43 // pred_region
          %279 = dma.done [#allocation7], 2048
        $region52: #{tpu_custom_call.1} parent=43 // pred_fallthru
          _
        // Predicated region
        $region53: #{tpu_custom_call.1} parent=43 // pred_check
          %p280 = pneg %p130
        $region54: #{tpu_custom_call.1} parent=43 // pred_check_branch
          %282 = sbr.rel (%p280) target = $region56
        $region55: #{tpu_custom_call.1} parent=43 // pred_region
          %283 = dma.done [#allocation7], 2048
        $region56: #{tpu_custom_call.1} parent=43 // pred_fallthru
          _
        // Predicated region
        $region57: #{tpu_custom_call.1} parent=43 // pred_check
          %p284 = pneg %p151
        $region58: #{tpu_custom_call.1} parent=43 // pred_check_branch
          %286 = sbr.rel (%p284) target = $region60
        $region59: #{tpu_custom_call.1} parent=43 // pred_region
          %287 = dma.done [#allocation5], 16
        $region60: #{tpu_custom_call.1} parent=43 // pred_fallthru
          _
        %288 = sfence
        %s289 = sand.u32 %s33, 1
        %s290 = scalar_lea.sflag [#allocation3], %s289
        %s291 = sand.u32 %s33, 1
        %s292 = smul.addr %s291, 80
        %s293 = scalar_lea.vmem [#allocation2], %s292
        %p294 = pneg %p46
        %p295 = pneg %p43
        %p296 = pneg %p67
        %p297 = pneg %p64
        %p298 = pneg %p88
        %p299 = pneg %p85
        %p300 = pneg %p109
        %p301 = pneg %p106
        %p302 = pneg %p130
        %p303 = pneg %p127
        %p304 = pneg %p151
        %p305 = pneg %p148
        %p306 = pneg %p177
        %p307 = pneg %p174
        %s308 = sand.u32 %s164, 1
        %s309 = scalar_lea.sflag [#allocation4], %s308
        %s310 = sand.u32 %s164, 1
        %s311 = smul.addr %s310, 8
        %s312 = scalar_lea.vmem [#allocation10], %s311
        %v313 = vld [vmem:[%s271] sm:$0xff]
        %v314 = vld [vmem:[%s271 + $0x8] sm:$0xff]
        %s315 = scalar_lea.vmem %s271, 16 [#allocation2]
        %v316 = vld [vmem:[%s315] sm:$0xff]
        %v317 = vld [vmem:[%s315 + $0x8] sm:$0xff]
        %vm318 = vcmp.gt.f32.partialorder %v316, %v313
        %vm319 = vcmp.gt.f32.partialorder %v317, %v314
        %v320 = vsel %vm318, %v316, %v313
        %v321 = vsel %vm319, %v317, %v314
        %v322 = vsel %vm318, 1, 0
        %v323 = vsel %vm319, 1, 0
        %s324 = scalar_lea.vmem %s271, 32 [#allocation2]
        %v325 = vld [vmem:[%s324] sm:$0xff]
        %v326 = vld [vmem:[%s324 + $0x8] sm:$0xff]
        %vm327 = vcmp.gt.f32.partialorder %v325, %v320
        %vm328 = vcmp.gt.f32.partialorder %v326, %v321
        %v329 = vsel %vm327, %v325, %v320
        %v330 = vsel %vm328, %v326, %v321
        %v331 = vsel %vm327, 2, %v322
        %v332 = vsel %vm328, 2, %v323
        %s333 = scalar_lea.vmem %s271, 48 [#allocation2]
        %v334 = vld [vmem:[%s333] sm:$0xff]
        %v335 = vld [vmem:[%s333 + $0x8] sm:$0xff]
        %vm336 = vcmp.gt.f32.partialorder %v334, %v329
        %vm337 = vcmp.gt.f32.partialorder %v335, %v330
        %v338 = vsel %vm336, %v334, %v329
        %v339 = vsel %vm337, %v335, %v330
        %v340 = vsel %vm336, 3, %v331
        %v341 = vsel %vm337, 3, %v332
        %s342 = scalar_lea.vmem %s271, 64 [#allocation2]
        %v343 = vld [vmem:[%s342] sm:$0xff]
        %v344 = vld [vmem:[%s342 + $0x8] sm:$0xff]
        %vm345 = vcmp.gt.f32.partialorder %v343, %v338
        %vm346 = vcmp.gt.f32.partialorder %v344, %v339
        %v347 = vsel %vm345, 4, %v340
        %v348 = vsel %vm346, 4, %v341
        %v349 = vlaneseq
        %v350 = vand.u32 %v349, 127
        %vm351 = vcmp.eq.s32.totalorder %v347, 0
        %v352 = vsel %vm351, 1.0, 0.0
        %vm353 = vcmask 64512
        %v354 = vsel %vm353, %v352, 0.0
        %355 = vadd.xlane.f32.xlu0 %v354
        %v356 = vpop.xlane.xlu0 %355
        %v357 = vrot.slane %v356, 4
        %v358 = vadd.f32 %v356, %v357
        %v359 = vrot.slane %v358, 2
        %v360 = vadd.f32 %v358, %v359
        %v361 = vrot.slane %v360, 1
        %v362 = vadd.f32 %v360, %v361
        %s363 = vtos %v362
        %vm364 = vcmp.eq.s32.totalorder %v348, 0
        %v365 = vsel %vm364, 1.0, 0.0
        %v366 = vsel %vm353, %v365, 0.0
        %367 = vadd.xlane.f32.xlu0 %v366
        %v368 = vpop.xlane.xlu0 %367
        %v369 = vrot.slane %v368, 4
        %v370 = vadd.f32 %v368, %v369
        %v371 = vrot.slane %v370, 2
        %v372 = vadd.f32 %v370, %v371
        %v373 = vrot.slane %v372, 1
        %v374 = vadd.f32 %v372, %v373
        %s375 = vtos %v374
        %377 = vrot.lane.b32.xlu0 %v352, 120
        %v378 = vpop.permute.xlu0 %377
        %v380 = vsel %vm353, %v378, 0.0
        %381 = vadd.xlane.f32.xlu0 %v380
        %v382 = vpop.xlane.xlu0 %381
        %v383 = vrot.slane %v382, 4
        %v384 = vadd.f32 %v382, %v383
        %v385 = vrot.slane %v384, 2
        %v386 = vadd.f32 %v384, %v385
        %v387 = vrot.slane %v386, 1
        %v388 = vadd.f32 %v386, %v387
        %s389 = vtos %v388
        %391 = vrot.lane.b32.xlu0 %v365, 120
        %v392 = vpop.permute.xlu0 %391
        %v394 = vsel %vm353, %v392, 0.0
        %395 = vadd.xlane.f32.xlu0 %v394
        %v396 = vpop.xlane.xlu0 %395
        %v397 = vrot.slane %v396, 4
        %v398 = vadd.f32 %v396, %v397
        %v399 = vrot.slane %v398, 2
        %v400 = vadd.f32 %v398, %v399
        %v401 = vrot.slane %v400, 1
        %v402 = vadd.f32 %v400, %v401
        %s403 = vtos %v402
        %s404 = sadd.f32 %s363, 0.0
        %s405 = sadd.f32 %s375, 0.0
        %s406 = sadd.f32 %s389, 0.0
        %s407 = sadd.f32 %s403, 0.0
        %s408 = sadd.f32 %s363, %s375
        %s409 = sadd.f32 %s408, %s389
        %s410 = sadd.f32 %s409, %s403
        %s411 = smul.f32 %s410, 0.00390625
        %vm412 = vcmp.eq.s32.totalorder %v350, 0
        %v413 = vstv %s411
        %v414 = vsel %vm412, %v413, 0.0
        %s415 = smul.f32 %s363, 0.015625
        %v416 = vstv %s415
        %v417 = vsel %vm412, %v416, 0.0
        %vm418 = vcmp.eq.s32.totalorder %v350, 5
        %s419 = smul.f32 %s375, 0.015625
        %v420 = vstv %s419
        %v421 = vsel %vm418, %v420, %v417
        %vm422 = vcmp.eq.s32.totalorder %v350, 10
        %s423 = smul.f32 %s389, 0.015625
        %v424 = vstv %s423
        %v425 = vsel %vm422, %v424, %v421
        %vm426 = vcmp.eq.s32.totalorder %v350, 15
        %s427 = smul.f32 %s403, 0.015625
        %v428 = vstv %s427
        %v429 = vsel %vm426, %v428, %v425
        %vm430 = vcmp.eq.s32.totalorder %v347, 1
        %v431 = vsel %vm430, 1.0, 0.0
        %v432 = vsel %vm353, %v431, 0.0
        %433 = vadd.xlane.f32.xlu0 %v432
        %v434 = vpop.xlane.xlu0 %433
        %v435 = vrot.slane %v434, 4
        %v436 = vadd.f32 %v434, %v435
        %v437 = vrot.slane %v436, 2
        %v438 = vadd.f32 %v436, %v437
        %v439 = vrot.slane %v438, 1
        %v440 = vadd.f32 %v438, %v439
        %s441 = vtos %v440
        %vm442 = vcmp.eq.s32.totalorder %v348, 1
        %v443 = vsel %vm442, 1.0, 0.0
        %v444 = vsel %vm353, %v443, 0.0
        %445 = vadd.xlane.f32.xlu0 %v444
        %v446 = vpop.xlane.xlu0 %445
        %v447 = vrot.slane %v446, 4
        %v448 = vadd.f32 %v446, %v447
        %v449 = vrot.slane %v448, 2
        %v450 = vadd.f32 %v448, %v449
        %v451 = vrot.slane %v450, 1
        %v452 = vadd.f32 %v450, %v451
        %s453 = vtos %v452
        %455 = vrot.lane.b32.xlu0 %v431, 120
        %v456 = vpop.permute.xlu0 %455
        %v458 = vsel %vm353, %v456, 0.0
        %459 = vadd.xlane.f32.xlu0 %v458
        %v460 = vpop.xlane.xlu0 %459
        %v461 = vrot.slane %v460, 4
        %v462 = vadd.f32 %v460, %v461
        %v463 = vrot.slane %v462, 2
        %v464 = vadd.f32 %v462, %v463
        %v465 = vrot.slane %v464, 1
        %v466 = vadd.f32 %v464, %v465
        %s467 = vtos %v466
        %469 = vrot.lane.b32.xlu0 %v443, 120
        %v470 = vpop.permute.xlu0 %469
        %v472 = vsel %vm353, %v470, 0.0
        %473 = vadd.xlane.f32.xlu0 %v472
        %v474 = vpop.xlane.xlu0 %473
        %v475 = vrot.slane %v474, 4
        %v476 = vadd.f32 %v474, %v475
        %v477 = vrot.slane %v476, 2
        %v478 = vadd.f32 %v476, %v477
        %v479 = vrot.slane %v478, 1
        %v480 = vadd.f32 %v478, %v479
        %s481 = vtos %v480
        %s482 = sadd.f32 %s404, %s441
        %s483 = sadd.f32 %s405, %s453
        %s484 = sadd.f32 %s406, %s467
        %s485 = sadd.f32 %s407, %s481
        %s486 = sadd.f32 %s441, %s453
        %s487 = sadd.f32 %s486, %s467
        %s488 = sadd.f32 %s487, %s481
        %s489 = smul.f32 %s488, 0.00390625
        %vm490 = vcmp.eq.s32.totalorder %v350, 1
        %v491 = vstv %s489
        %v492 = vsel %vm490, %v491, %v414
        %s493 = smul.f32 %s441, 0.015625
        %v494 = vstv %s493
        %v495 = vsel %vm490, %v494, %v429
        %vm496 = vcmp.eq.s32.totalorder %v350, 6
        %s497 = smul.f32 %s453, 0.015625
        %v498 = vstv %s497
        %v499 = vsel %vm496, %v498, %v495
        %vm500 = vcmp.eq.s32.totalorder %v350, 11
        %s501 = smul.f32 %s467, 0.015625
        %v502 = vstv %s501
        %v503 = vsel %vm500, %v502, %v499
        %vm504 = vcmp.eq.s32.totalorder %v350, 16
        %s505 = smul.f32 %s481, 0.015625
        %v506 = vstv %s505
        %v507 = vsel %vm504, %v506, %v503
        %vm508 = vcmp.eq.s32.totalorder %v347, 2
        %v509 = vsel %vm508, 1.0, 0.0
        %v510 = vsel %vm353, %v509, 0.0
        %511 = vadd.xlane.f32.xlu0 %v510
        %v512 = vpop.xlane.xlu0 %511
        %v513 = vrot.slane %v512, 4
        %v514 = vadd.f32 %v512, %v513
        %v515 = vrot.slane %v514, 2
        %v516 = vadd.f32 %v514, %v515
        %v517 = vrot.slane %v516, 1
        %v518 = vadd.f32 %v516, %v517
        %s519 = vtos %v518
        %vm520 = vcmp.eq.s32.totalorder %v348, 2
        %v521 = vsel %vm520, 1.0, 0.0
        %v522 = vsel %vm353, %v521, 0.0
        %523 = vadd.xlane.f32.xlu0 %v522
        %v524 = vpop.xlane.xlu0 %523
        %v525 = vrot.slane %v524, 4
        %v526 = vadd.f32 %v524, %v525
        %v527 = vrot.slane %v526, 2
        %v528 = vadd.f32 %v526, %v527
        %v529 = vrot.slane %v528, 1
        %v530 = vadd.f32 %v528, %v529
        %s531 = vtos %v530
        %533 = vrot.lane.b32.xlu0 %v509, 120
        %v534 = vpop.permute.xlu0 %533
        %v536 = vsel %vm353, %v534, 0.0
        %537 = vadd.xlane.f32.xlu0 %v536
        %v538 = vpop.xlane.xlu0 %537
        %v539 = vrot.slane %v538, 4
        %v540 = vadd.f32 %v538, %v539
        %v541 = vrot.slane %v540, 2
        %v542 = vadd.f32 %v540, %v541
        %v543 = vrot.slane %v542, 1
        %v544 = vadd.f32 %v542, %v543
        %s545 = vtos %v544
        %547 = vrot.lane.b32.xlu0 %v521, 120
        %v548 = vpop.permute.xlu0 %547
        %v550 = vsel %vm353, %v548, 0.0
        %551 = vadd.xlane.f32.xlu0 %v550
        %v552 = vpop.xlane.xlu0 %551
        %v553 = vrot.slane %v552, 4
        %v554 = vadd.f32 %v552, %v553
        %v555 = vrot.slane %v554, 2
        %v556 = vadd.f32 %v554, %v555
        %v557 = vrot.slane %v556, 1
        %v558 = vadd.f32 %v556, %v557
        %s559 = vtos %v558
        %s560 = sadd.f32 %s482, %s519
        %s561 = sadd.f32 %s483, %s531
        %s562 = sadd.f32 %s484, %s545
        %s563 = sadd.f32 %s485, %s559
        %s564 = sadd.f32 %s519, %s531
        %s565 = sadd.f32 %s564, %s545
        %s566 = sadd.f32 %s565, %s559
        %s567 = smul.f32 %s566, 0.00390625
        %vm568 = vcmp.eq.s32.totalorder %v350, 2
        %v569 = vstv %s567
        %v570 = vsel %vm568, %v569, %v492
        %s571 = smul.f32 %s519, 0.015625
        %v572 = vstv %s571
        %v573 = vsel %vm568, %v572, %v507
        %vm574 = vcmp.eq.s32.totalorder %v350, 7
        %s575 = smul.f32 %s531, 0.015625
        %v576 = vstv %s575
        %v577 = vsel %vm574, %v576, %v573
        %vm578 = vcmp.eq.s32.totalorder %v350, 12
        %s579 = smul.f32 %s545, 0.015625
        %v580 = vstv %s579
        %v581 = vsel %vm578, %v580, %v577
        %vm582 = vcmp.eq.s32.totalorder %v350, 17
        %s583 = smul.f32 %s559, 0.015625
        %v584 = vstv %s583
        %v585 = vsel %vm582, %v584, %v581
        %vm586 = vcmp.eq.s32.totalorder %v347, 3
        %v587 = vsel %vm586, 1.0, 0.0
        %v588 = vsel %vm353, %v587, 0.0
        %589 = vadd.xlane.f32.xlu0 %v588
        %v590 = vpop.xlane.xlu0 %589
        %v591 = vrot.slane %v590, 4
        %v592 = vadd.f32 %v590, %v591
        %v593 = vrot.slane %v592, 2
        %v594 = vadd.f32 %v592, %v593
        %v595 = vrot.slane %v594, 1
        %v596 = vadd.f32 %v594, %v595
        %s597 = vtos %v596
        %vm598 = vcmp.eq.s32.totalorder %v348, 3
        %v599 = vsel %vm598, 1.0, 0.0
        %v600 = vsel %vm353, %v599, 0.0
        %601 = vadd.xlane.f32.xlu0 %v600
        %v602 = vpop.xlane.xlu0 %601
        %v603 = vrot.slane %v602, 4
        %v604 = vadd.f32 %v602, %v603
        %v605 = vrot.slane %v604, 2
        %v606 = vadd.f32 %v604, %v605
        %v607 = vrot.slane %v606, 1
        %v608 = vadd.f32 %v606, %v607
        %s609 = vtos %v608
        %611 = vrot.lane.b32.xlu0 %v587, 120
        %v612 = vpop.permute.xlu0 %611
        %v614 = vsel %vm353, %v612, 0.0
        %615 = vadd.xlane.f32.xlu0 %v614
        %v616 = vpop.xlane.xlu0 %615
        %v617 = vrot.slane %v616, 4
        %v618 = vadd.f32 %v616, %v617
        %v619 = vrot.slane %v618, 2
        %v620 = vadd.f32 %v618, %v619
        %v621 = vrot.slane %v620, 1
        %v622 = vadd.f32 %v620, %v621
        %s623 = vtos %v622
        %625 = vrot.lane.b32.xlu0 %v599, 120
        %v626 = vpop.permute.xlu0 %625
        %v628 = vsel %vm353, %v626, 0.0
        %629 = vadd.xlane.f32.xlu0 %v628
        %v630 = vpop.xlane.xlu0 %629
        %v631 = vrot.slane %v630, 4
        %v632 = vadd.f32 %v630, %v631
        %v633 = vrot.slane %v632, 2
        %v634 = vadd.f32 %v632, %v633
        %v635 = vrot.slane %v634, 1
        %v636 = vadd.f32 %v634, %v635
        %s637 = vtos %v636
        %s638 = sadd.f32 %s560, %s597
        %s639 = sadd.f32 %s561, %s609
        %s640 = sadd.f32 %s562, %s623
        %s641 = sadd.f32 %s563, %s637
        %s642 = sadd.f32 %s597, %s609
        %s643 = sadd.f32 %s642, %s623
        %s644 = sadd.f32 %s643, %s637
        %s645 = smul.f32 %s644, 0.00390625
        %vm646 = vcmp.eq.s32.totalorder %v350, 3
        %v647 = vstv %s645
        %v648 = vsel %vm646, %v647, %v570
        %s649 = smul.f32 %s597, 0.015625
        %v650 = vstv %s649
        %v651 = vsel %vm646, %v650, %v585
        %vm652 = vcmp.eq.s32.totalorder %v350, 8
        %s653 = smul.f32 %s609, 0.015625
        %v654 = vstv %s653
        %v655 = vsel %vm652, %v654, %v651
        %vm656 = vcmp.eq.s32.totalorder %v350, 13
        %s657 = smul.f32 %s623, 0.015625
        %v658 = vstv %s657
        %v659 = vsel %vm656, %v658, %v655
        %vm660 = vcmp.eq.s32.totalorder %v350, 18
        %s661 = smul.f32 %s637, 0.015625
        %v662 = vstv %s661
        %v663 = vsel %vm660, %v662, %v659
        %s664 = ssub.f32 64.0, %s638
        %s665 = ssub.f32 64.0, %s639
        %s666 = ssub.f32 64.0, %s640
        %s667 = ssub.f32 64.0, %s641
        %s668 = sadd.f32 %s664, %s665
        %s669 = sadd.f32 %s668, %s666
        %s670 = sadd.f32 %s669, %s667
        %s671 = smul.f32 %s670, 0.00390625
        %vm672 = vcmp.eq.s32.totalorder %v350, 4
        %v673 = vstv %s671
        %v674 = vsel %vm672, %v673, %v648
        %s675 = smul.f32 %s664, 0.015625
        %v676 = vstv %s675
        %v677 = vsel %vm672, %v676, %v663
        %vm678 = vcmp.eq.s32.totalorder %v350, 9
        %s679 = smul.f32 %s665, 0.015625
        %v680 = vstv %s679
        %v681 = vsel %vm678, %v680, %v677
        %vm682 = vcmp.eq.s32.totalorder %v350, 14
        %s683 = smul.f32 %s666, 0.015625
        %v684 = vstv %s683
        %v685 = vsel %vm682, %v684, %v681
        %vm686 = vcmp.eq.s32.totalorder %v350, 19
        %s687 = smul.f32 %s667, 0.015625
        %v688 = vstv %s687
        %v689 = vsel %vm686, %v688, %v685
        %v690 = vld [vmem:[%s1] sm:$0x1]
        %v691 = vsub.f32 %v674, %v690
        %v692 = vld [vmem:[#allocation6] sm:$0xff]
        %v693 = vld [vmem:[#allocation6 + $0x8] sm:$0xff]
        %v694 = vld [vmem:[#allocation6 + $0x10] sm:$0xff]
        %v695 = vld [vmem:[#allocation6 + $0x18] sm:$0xff]
        %v696 = vld [vmem:[#allocation6 + $0x20] sm:$0xff]
        %v697 = vld [vmem:[#allocation6 + $0x28] sm:$0xff]
        %v698 = vld [vmem:[#allocation6 + $0x30] sm:$0xff]
        %v699 = vld [vmem:[#allocation6 + $0x38] sm:$0xff]
        %v700 = vld [vmem:[#allocation6 + $0x40] sm:$0xff]
        %v701 = vld [vmem:[#allocation6 + $0x48] sm:$0xff]
        %v702 = vld [vmem:[#allocation6 + $0x50] sm:$0xff]
        %v703 = vld [vmem:[#allocation6 + $0x58] sm:$0xff]
        %v704 = vld [vmem:[#allocation6 + $0x60] sm:$0xff]
        %v705 = vld [vmem:[#allocation6 + $0x68] sm:$0xff]
        %v706 = vld [vmem:[#allocation6 + $0x70] sm:$0xff]
        %v707 = vld [vmem:[#allocation6 + $0x78] sm:$0xff]
        %708 = vmatprep.subr.mxu0 0.0
        %709 = vmatpush1.msra.mxu0 %v692
        %710 = vmatprep.subr.mxu0 0.0
        %711 = vmatpush1.msra.mxu0 %v693
        %712 = vmatprep.subr.mxu0 0.0
        %713 = vmatpush1.msra.mxu0 %v694
        %714 = vmatprep.subr.mxu0 0.0
        %715 = vmatpush1.msra.mxu0 %v695
        %716 = vmatprep.subr.mxu0 0.0
        %717 = vmatpush1.msra.mxu0 %v696
        %718 = vmatprep.subr.mxu0 0.0
        %719 = vmatpush1.msra.mxu0 %v697
        %720 = vmatprep.subr.mxu0 0.0
        %721 = vmatpush1.msra.mxu0 %v698
        %722 = vmatprep.subr.mxu0 0.0
        %723 = vmatpush1.msra.mxu0 %v699
        %724 = vmatprep.subr.mxu0 0.0
        %725 = vmatpush1.msra.mxu0 %v700
        %726 = vmatprep.subr.mxu0 0.0
        %727 = vmatpush1.msra.mxu0 %v701
        %728 = vmatprep.subr.mxu0 0.0
        %729 = vmatpush1.msra.mxu0 %v702
        %730 = vmatprep.subr.mxu0 0.0
        %731 = vmatpush1.msra.mxu0 %v703
        %732 = vmatprep.subr.mxu0 0.0
        %733 = vmatpush1.msra.mxu0 %v704
        %734 = vmatprep.subr.mxu0 0.0
        %735 = vmatpush1.msra.mxu0 %v705
        %736 = vmatprep.subr.mxu0 0.0
        %737 = vmatpush1.msra.mxu0 %v706
        %738 = vmatprep.subr.mxu0 0.0
        %739 = vmatpush1.msra.mxu0 %v707
        %740 = vmatprep.subr.mxu0 0.0
        %741 = vmatpush1.msra.mxu0 0.0
        %742 = vmatprep.subr.mxu0 0.0
        %743 = vmatpush1.msra.mxu0 0.0
        %744 = vmatprep.subr.mxu0 0.0
        %745 = vmatpush1.msra.mxu0 0.0
        %746 = vmatprep.subr.mxu0 0.0
        %747 = vmatpush1.msra.mxu0 0.0
        %748 = vmatprep.subr.mxu0 0.0
        %749 = vmatpush1.msra.mxu0 0.0
        %750 = vmatprep.subr.mxu0 0.0
        %751 = vmatpush1.msra.mxu0 0.0
        %752 = vmatprep.subr.mxu0 0.0
        %753 = vmatpush1.msra.mxu0 0.0
        %754 = vmatprep.subr.mxu0 0.0
        %755 = vmatpush1.msra.mxu0 0.0
        %756 = vmatprep.subr.mxu0 0.0
        %757 = vmatpush1.msra.mxu0 0.0
        %758 = vmatprep.subr.mxu0 0.0
        %759 = vmatpush1.msra.mxu0 0.0
        %760 = vmatprep.subr.mxu0 0.0
        %761 = vmatpush1.msra.mxu0 0.0
        %762 = vmatprep.subr.mxu0 0.0
        %763 = vmatpush1.msra.mxu0 0.0
        %764 = vmatprep.subr.mxu0 0.0
        %765 = vmatpush1.msra.mxu0 0.0
        %766 = vmatprep.subr.mxu0 0.0
        %767 = vmatpush1.msra.mxu0 0.0
        %768 = vmatprep.subr.mxu0 0.0
        %769 = vmatpush1.msra.mxu0 0.0
        %770 = vmatprep.subr.mxu0 0.0
        %771 = vmatpush1.msra.mxu0 0.0
        %772 = vmatprep.mubr.f32.mxu0 0.0
        %773 = vmatmul.mubr.f32.gmra.mrb[0].mxu0 %v691
        %v774 = vpop.f32.mrb[0].mxu0
        %v775 = vadd.f32 0.0, %v774
        %v776 = vpop.f32.mrb[0].mxu0
        %777 = vdwg.mxu0
        %v778 = vmul.f32 %v775, %v691
        %vm779 = vcmask 1040384
        %v780 = vsel %vm779, %v778, 0.0
        %781 = vadd.xlane.f32.xlu0 %v780
        %v782 = vpop.xlane.xlu0 %781
        %v783 = vrot.slane %v782, 4
        %v784 = vadd.f32 %v782, %v783
        %v785 = vrot.slane %v784, 2
        %v786 = vadd.f32 %v784, %v785
        %v787 = vrot.slane %v786, 1
        %v788 = vadd.f32 %v786, %v787
        %s789 = vtos %v788
        %s790 = smax.f32 %s789, 0.0
        %v791 = vstv %s790
        %v792 = vrsqrt.pop %v791
        %v793 = vmul.f32 %v791, %v792
        %vm794 = vcmp.eq.f32.partialorder %v791, inf
        %v795 = vsel %vm794, %v791, %v793
        %vm796 = vcmp.eq.f32.partialorder %v791, 0.0
        %v797 = vand.u32 %v791, 2147483648
        %v798 = vsel %vm796, %v797, %v795
        %s799 = vtos %v798
        %v800 = vld [vmem:[%s3] sm:$0x1]
        %v801 = vsub.f32 %v689, %v800
        %v802 = vld [vmem:[#allocation8] sm:$0xff]
        %v803 = vld [vmem:[#allocation8 + $0x8] sm:$0xff]
        %v804 = vld [vmem:[#allocation8 + $0x10] sm:$0xff]
        %v805 = vld [vmem:[#allocation8 + $0x18] sm:$0xff]
        %v806 = vld [vmem:[#allocation8 + $0x20] sm:$0xff]
        %v807 = vld [vmem:[#allocation8 + $0x28] sm:$0xff]
        %v808 = vld [vmem:[#allocation8 + $0x30] sm:$0xff]
        %v809 = vld [vmem:[#allocation8 + $0x38] sm:$0xff]
        %v810 = vld [vmem:[#allocation8 + $0x40] sm:$0xff]
        %v811 = vld [vmem:[#allocation8 + $0x48] sm:$0xff]
        %v812 = vld [vmem:[#allocation8 + $0x50] sm:$0xff]
        %v813 = vld [vmem:[#allocation8 + $0x58] sm:$0xff]
        %v814 = vld [vmem:[#allocation8 + $0x60] sm:$0xff]
        %v815 = vld [vmem:[#allocation8 + $0x68] sm:$0xff]
        %v816 = vld [vmem:[#allocation8 + $0x70] sm:$0xff]
        %v817 = vld [vmem:[#allocation8 + $0x78] sm:$0xff]
        %818 = vmatprep.subr.mxu0 0.0
        %819 = vmatpush1.msra.mxu0 %v802
        %820 = vmatprep.subr.mxu0 0.0
        %821 = vmatpush1.msra.mxu0 %v803
        %822 = vmatprep.subr.mxu0 0.0
        %823 = vmatpush1.msra.mxu0 %v804
        %824 = vmatprep.subr.mxu0 0.0
        %825 = vmatpush1.msra.mxu0 %v805
        %826 = vmatprep.subr.mxu0 0.0
        %827 = vmatpush1.msra.mxu0 %v806
        %828 = vmatprep.subr.mxu0 0.0
        %829 = vmatpush1.msra.mxu0 %v807
        %830 = vmatprep.subr.mxu0 0.0
        %831 = vmatpush1.msra.mxu0 %v808
        %832 = vmatprep.subr.mxu0 0.0
        %833 = vmatpush1.msra.mxu0 %v809
        %834 = vmatprep.subr.mxu0 0.0
        %835 = vmatpush1.msra.mxu0 %v810
        %836 = vmatprep.subr.mxu0 0.0
        %837 = vmatpush1.msra.mxu0 %v811
        %838 = vmatprep.subr.mxu0 0.0
        %839 = vmatpush1.msra.mxu0 %v812
        %840 = vmatprep.subr.mxu0 0.0
        %841 = vmatpush1.msra.mxu0 %v813
        %842 = vmatprep.subr.mxu0 0.0
        %843 = vmatpush1.msra.mxu0 %v814
        %844 = vmatprep.subr.mxu0 0.0
        %845 = vmatpush1.msra.mxu0 %v815
        %846 = vmatprep.subr.mxu0 0.0
        %847 = vmatpush1.msra.mxu0 %v816
        %848 = vmatprep.subr.mxu0 0.0
        %849 = vmatpush1.msra.mxu0 %v817
        %850 = vmatprep.subr.mxu0 0.0
        %851 = vmatpush1.msra.mxu0 0.0
        %852 = vmatprep.subr.mxu0 0.0
        %853 = vmatpush1.msra.mxu0 0.0
        %854 = vmatprep.subr.mxu0 0.0
        %855 = vmatpush1.msra.mxu0 0.0
        %856 = vmatprep.subr.mxu0 0.0
        %857 = vmatpush1.msra.mxu0 0.0
        %858 = vmatprep.subr.mxu0 0.0
        %859 = vmatpush1.msra.mxu0 0.0
        %860 = vmatprep.subr.mxu0 0.0
        %861 = vmatpush1.msra.mxu0 0.0
        %862 = vmatprep.subr.mxu0 0.0
        %863 = vmatpush1.msra.mxu0 0.0
        %864 = vmatprep.subr.mxu0 0.0
        %865 = vmatpush1.msra.mxu0 0.0
        %866 = vmatprep.subr.mxu0 0.0
        %867 = vmatpush1.msra.mxu0 0.0
        %868 = vmatprep.subr.mxu0 0.0
        %869 = vmatpush1.msra.mxu0 0.0
        %870 = vmatprep.subr.mxu0 0.0
        %871 = vmatpush1.msra.mxu0 0.0
        %872 = vmatprep.subr.mxu0 0.0
        %873 = vmatpush1.msra.mxu0 0.0
        %874 = vmatprep.subr.mxu0 0.0
        %875 = vmatpush1.msra.mxu0 0.0
        %876 = vmatprep.subr.mxu0 0.0
        %877 = vmatpush1.msra.mxu0 0.0
        %878 = vmatprep.subr.mxu0 0.0
        %879 = vmatpush1.msra.mxu0 0.0
        %880 = vmatprep.subr.mxu0 0.0
        %881 = vmatpush1.msra.mxu0 0.0
        %882 = vmatprep.mubr.f32.mxu0 0.0
        %883 = vmatmul.mubr.f32.gmra.mrb[0].mxu0 %v801
        %v884 = vpop.f32.mrb[0].mxu0
        %v885 = vadd.f32 0.0, %v884
        %v886 = vpop.f32.mrb[0].mxu0
        %887 = vdwg.mxu0
        %v888 = vmul.f32 %v885, %v801
        %v889 = vsel %vm779, %v888, 0.0
        %890 = vadd.xlane.f32.xlu0 %v889
        %v891 = vpop.xlane.xlu0 %890
        %v892 = vrot.slane %v891, 4
        %v893 = vadd.f32 %v891, %v892
        %v894 = vrot.slane %v893, 2
        %v895 = vadd.f32 %v893, %v894
        %v896 = vrot.slane %v895, 1
        %v897 = vadd.f32 %v895, %v896
        %s898 = vtos %v897
        %s899 = smax.f32 %s898, 0.0
        %v900 = vstv %s899
        %v901 = vrsqrt.pop %v900
        %v902 = vmul.f32 %v900, %v901
        %vm903 = vcmp.eq.f32.partialorder %v900, inf
        %v904 = vsel %vm903, %v900, %v902
        %vm905 = vcmp.eq.f32.partialorder %v900, 0.0
        %v906 = vand.u32 %v900, 2147483648
        %v907 = vsel %vm905, %v906, %v904
        %s908 = vtos %v907
        %s909 = sld [smem:[#allocation9]]
        %s910 = ssub.f32 %s799, %s909
        %s911 = sld [smem:[#allocation9 + $0x1]]
        %v912 = vstv %s911
        %v913 = vrcp.pop %v912
        %s914 = vtos %v913
        %s915 = smul.f32 %s910, %s914
        %s916 = sld [smem:[#allocation9 + $0x2]]
        %s917 = ssub.f32 %s908, %s916
        %s918 = sld [smem:[#allocation9 + $0x3]]
        %v919 = vstv %s918
        %v920 = vrcp.pop %v919
        %s921 = vtos %v920
        %s922 = smul.f32 %s917, %s921
        %s923 = sadd.f32 %s915, %s922
        %v924 = vstv %s923
        %v925 = vadd.f32 %v924, 0.0
        %926 = vst [vmem:[%s312] sm:$0xff] %v925
        %s927 = sand.u32 %s164, 1
        %s928 = scalar_lea.sflag [#allocation4], %s927
        %s929 = sand.u32 %s164, 1
        %s930 = smul.addr %s929, 8
        %s931 = scalar_lea.vmem [#allocation10], %s930
        // Predicated region
        $region61: #{tpu_custom_call.1} parent=43 // pred_check
          %p932 = pneg %p174
        $region62: #{tpu_custom_call.1} parent=43 // pred_check_branch
          %934 = sbr.rel (%p932) target = $region64
        $region63: #{tpu_custom_call.1} parent=43 // pred_region
          %s936 = ssub.s32 128, 128
          %937 = vsyncadd %s928, %s936
          %s938 = smul.addr %s25, 128
          %s939 = scalar_lea.hbm %s6, %s938
          %s941 = sshll.u32 %s931, 4
          %s942 = int_to_ptr.vmem [resolvable:$true] %s941
          %944 = dma.vmem_to_hbm [thread:$0]  %s942, 128, %s939, %s928
        $region64: #{tpu_custom_call.1} parent=43 // pred_fallthru
          _
      $region44: #{tpu_custom_call.1} parent=5 // pred_fallthru
        _
      %p945 = scmp.le.s32.totalorder 2, %s20
      // Predicated region
      $region65: #{tpu_custom_call.1} parent=5 // pred_check
        %p946 = pneg %p945
      $region66: #{tpu_custom_call.1} parent=5 // pred_check_branch
        %948 = sbr.rel (%p946) target = $region68
      $region67: #{tpu_custom_call.1} parent=5 // pred_region
        %s949 = ssub.s32 %s20, 2
        // Predicated region
        $region69: #{tpu_custom_call.1} parent=67 // pred_check
          %p950 = pneg %p180
        $region70: #{tpu_custom_call.1} parent=67 // pred_check_branch
          %952 = sbr.rel (%p950) target = $region72
        $region71: #{tpu_custom_call.1} parent=67 // pred_region
          %s953 = sand.u32 %s165, 1
          %s954 = scalar_lea.sflag [#allocation4], %s953
          %s955 = sand.u32 %s165, 1
          %s956 = smul.addr %s955, 8
          %s957 = scalar_lea.vmem [#allocation10], %s956
          %958 = dma.done %s954, 128
        $region72: #{tpu_custom_call.1} parent=67 // pred_fallthru
          _
      $region68: #{tpu_custom_call.1} parent=5 // pred_fallthru
        _
    $region6: #{tpu_custom_call.1} parent=1 // loop_footer
      %s24 = sadd.s32 1, %s20
    $region7: #{tpu_custom_call.1} parent=1 // loop_footer_branch
      %19 = sbr.rel target = $region3
    $region8: #{tpu_custom_call.1} parent=1 // loop_exit
      _
    %959 = vsyncpa [#allocation3], 1
    %s960 = scalar_lea.sflag [#allocation3], 1
    %961 = vsyncpa %s960, 1
    %962 = vsyncpa [#allocation7], 1
    %963 = vsyncpa [#allocation4], 1
    %s964 = scalar_lea.sflag [#allocation4], 1
    %965 = vsyncpa %s964, 1
    %966 = vsyncpa [#allocation5], 1
    %s967 = scalar_lea.sflag [#allocation5], 1
    %968 = vsyncpa %s967, 1

</llo_original>
